<compile_context>
chip_gen: v7x
topology: tpu7x:2x2x1
jax: 0.10.0
libtpu: 0.0.40
codegen_flags: <defaults>
</compile_context>

<pallas_src>
import jax
import jax.numpy as jnp
import numpy as np
from jax.experimental import pallas as pl
from jax.experimental.pallas import tpu as pltpu


# ------------------------------ fused kernel ------------------------------- #

def _drconv_bn(x, region, w_ref, scale_ref, bias_ref, *, relu):
    """Region-aware dynamic 1x1 conv (+ fused inference BN, optional ReLU).

    y[p] = x[p] @ w[region[p]] computed as ONE matmul by folding the per-pixel
    one-hot into the contraction dimension:
        x_aug[p, g*C + c] = (region[p] == g) * x[p, c]
        y               = x_aug @ w.reshape(G*C, Cout)
    """
    P, C = x.shape
    GC = w_ref.shape[0]                               # G * C (static)
    # Replicate x G times along lanes using a constant 0/1 matrix on the
    # (otherwise idle) MXU:  rep[c, j] = 1 iff j % C == c.
    col = jax.lax.broadcasted_iota(jnp.int32, (C, GC), 1)
    row = jax.lax.broadcasted_iota(jnp.int32, (C, GC), 0)
    rep = (col % C == row).astype(jnp.float32)
    x_rep = jnp.dot(x, rep, preferred_element_type=jnp.float32)        # (P, G*C)
    # Keep only the selected bank's columns: j // C == region[p].
    j = jax.lax.broadcasted_iota(jnp.int32, (P, GC), 1)
    sel = (j >= region * C) & (j < (region + 1) * C)
    x_aug = jnp.where(sel, x_rep, 0.0)
    y = jnp.dot(x_aug, w_ref[...], preferred_element_type=jnp.float32)  # (P, Cout)
    y = y * scale_ref[...] + bias_ref[...]
    return jnp.maximum(y, 0.0) if relu else y


def _right_branch_kernel(x_ref, wm_ref, wa_ref, sa_ref, ba_ref,
                         wb_ref, sb_ref, bb_ref, wc_ref, sc_ref, bc_ref,
                         out_ref, pad_ref):
    """masknet -> DRConv_a -> depthwise 3x3 -> DRConv_c for one image."""
    H = pad_ref.shape[0] - 2
    W = pad_ref.shape[1] - 2
    G = wm_ref.shape[1]

    x = x_ref[0, :, :].T                              # (H*W, Cin): pixels on sublanes

    # masknet -> per-pixel region index (softmax dropped: argmax-invariant).
    logits = jnp.dot(x, wm_ref[...], preferred_element_type=jnp.float32)   # (HW, G)
    g_iota = jax.lax.broadcasted_iota(jnp.int32, logits.shape, 1)
    is_max = logits >= jnp.max(logits, axis=-1, keepdims=True)
    region = jnp.min(jnp.where(is_max, g_iota, G), axis=-1, keepdims=True)  # first argmax

    # conva_right: DRConv + BN + ReLU.
    y = _drconv_bn(x, region, wa_ref, sa_ref, ba_ref, relu=True)            # (HW, mid)
    mid = y.shape[1]

    # convb_right: depthwise 3x3, stride 1, padding 1, + BN (no ReLU).
    # Halo padding done in VMEM scratch; the activation never leaves the chip.
    pad_ref[...] = jnp.zeros_like(pad_ref)
    for h in range(H):                                # static, unrolled row writes
        pad_ref[h + 1, 1:W + 1, :] = y[h * W:(h + 1) * W, :]
    acc = jnp.zeros((H, W, mid), jnp.float32)
    for dy in range(3):
        for dx in range(3):
            acc = acc + pad_ref[dy:dy + H, dx:dx + W, :] * wb_ref[dy * 3 + dx]
    acc = acc * sb_ref[...] + bb_ref[...]
    yb = jnp.concatenate([acc[h] for h in range(H)], axis=0)                # (HW, mid)

    # convc_right: DRConv + BN + ReLU.
    yc = _drconv_bn(yb, region, wc_ref, sc_ref, bc_ref, relu=True)          # (HW, r_oup)

    # Lane-dense store: (right_oup, H*W) reshapes straight to NCHW outside.
    out_ref[0, :, :] = yc.T


# ------------------------------- forward pass ------------------------------- #

def make_block_forward(x_nchw, p):
    """make_block.forward, stride=1 (inp == oup, left branch is identity)."""
    B, C, H, W = x_nchw.shape
    HW = H * W
    # channel_shuffle_v2: even channels -> x_proj (left), odd -> right branch.
    x_proj = x_nchw[:, 0::2]
    xr = x_nchw[:, 1::2]                              # (B, Cin, H, W)
    Cin = xr.shape[1]
    G = p["wm"].shape[1]
    mid = p["w_a"].shape[2]
    right_oup = p["w_c"].shape[2]

    xr_flat = xr.reshape(B, Cin, HW)                  # NCHW-flat; no XLA transpose
    wa2 = p["w_a"].reshape(G * Cin, mid)              # banks folded into K
    wc2 = p["w_c"].reshape(G * mid, right_oup)

    y = pl.pallas_call(
        _right_branch_kernel,
        out_shape=jax.ShapeDtypeStruct((B, right_oup, HW), jnp.float32),
        grid=(B,),
        in_specs=[
            pl.BlockSpec((1, Cin, HW), lambda b: (b, 0, 0)),        # right-branch input
            pl.BlockSpec((Cin, G), lambda b: (0, 0)),               # masknet weight
            pl.BlockSpec((G * Cin, mid), lambda b: (0, 0)),         # DRConv a banks
            pl.BlockSpec((1, mid), lambda b: (0, 0)),               # BN a scale
            pl.BlockSpec((1, mid), lambda b: (0, 0)),               # BN a bias
            pl.BlockSpec((9, mid), lambda b: (0, 0)),               # depthwise 3x3 taps
            pl.BlockSpec((1, mid), lambda b: (0, 0)),               # BN b scale
            pl.BlockSpec((1, mid), lambda b: (0, 0)),               # BN b bias
            pl.BlockSpec((G * mid, right_oup), lambda b: (0, 0)),   # DRConv c banks
            pl.BlockSpec((1, right_oup), lambda b: (0, 0)),         # BN c scale
            pl.BlockSpec((1, right_oup), lambda b: (0, 0)),         # BN c bias
        ],
        out_specs=pl.BlockSpec((1, right_oup, HW), lambda b: (b, 0, 0)),
        scratch_shapes=[pltpu.VMEM((H + 2, W + 2, mid), jnp.float32)],
        compiler_params=pltpu.CompilerParams(dimension_semantics=("parallel",)),
    )(xr_flat, p["wm"], wa2, p["scale_a"], p["bias_a"],
      p["w_b"], p["scale_b"], p["bias_b"], wc2, p["scale_c"], p["bias_c"])

    y_nchw = y.reshape(B, right_oup, H, W)            # already channels-first
    return jnp.concatenate([x_proj, y_nchw], axis=1)


# --------------------------- pure-JAX reference ----------------------------- #

def reference_forward(x_nchw, p):
    B, C, H, W = x_nchw.shape
    x_proj = x_nchw[:, 0::2]
    xr = x_nchw[:, 1::2]
    xf = jnp.transpose(xr, (0, 2, 3, 1)).reshape(B * H * W, -1)
    logits = xf @ p["wm"]
    G = p["wm"].shape[1]
    # torch: argmax(softmax(logits)); softmax is monotonic, so argmax(logits).
    oh = jax.nn.one_hot(jnp.argmax(logits, axis=-1), G, dtype=jnp.float32)

    def dr(xi, w, s, b, relu):
        y = jnp.einsum("pg,pc,gcd->pd", oh, xi, w) * s + b
        return jnp.maximum(y, 0.0) if relu else y

    y = dr(xf, p["w_a"], p["scale_a"], p["bias_a"], True)
    mid = y.shape[1]
    yi = y.reshape(B, H, W, mid)
    xp = jnp.pad(yi, ((0, 0), (1, 1), (1, 1), (0, 0)))
    acc = jnp.zeros_like(yi)
    for dy in range(3):
        for dx in range(3):
            acc = acc + xp[:, dy:dy + H, dx:dx + W, :] * p["w_b"][dy * 3 + dx]
    y = acc * p["scale_b"] + p["bias_b"]
    y = dr(y.reshape(B * H * W, mid), p["w_c"], p["scale_c"], p["bias_c"], True)
    y = jnp.transpose(y.reshape(B, H, W, -1), (0, 3, 1, 2))
    return jnp.concatenate([x_proj, y], axis=1)


# ------------------------------ parameter init ------------------------------ #

def init_params(key, inp, oup, G=8):
    inp_eff = inp // 2             # stride == 1
    mid = oup // 2
    right_oup = oup - inp_eff
    ks = jax.random.split(key, 7)

    def bn_affine(k, c):
        k1, k2, k3, k4 = jax.random.split(k, 4)
        gamma = jax.random.uniform(k1, (c,), minval=0.5, maxval=1.5)
        beta = 0.1 * jax.random.normal(k2, (c,))
        mean = 0.1 * jax.random.normal(k3, (c,))
        var = jax.random.uniform(k4, (c,), minval=0.5, maxval=1.5)
        scale = gamma / jnp.sqrt(var + 1e-5)
        bias = beta - mean * scale
        return (scale.reshape(1, c).astype(jnp.float32),
                bias.reshape(1, c).astype(jnp.float32))

    p = {}
    p["wm"] = (0.3 * jax.random.normal(ks[0], (inp_eff, G))).astype(jnp.float32)
    p["w_a"] = (0.3 * jax.random.normal(ks[1], (G, inp_eff, mid))).astype(jnp.float32)
    p["scale_a"], p["bias_a"] = bn_affine(ks[2], mid)
    p["w_b"] = (0.3 * jax.random.normal(ks[3], (9, mid))).astype(jnp.float32)
    p["scale_b"], p["bias_b"] = bn_affine(ks[4], mid)
    p["w_c"] = (0.3 * jax.random.normal(ks[5], (G, mid, right_oup))).astype(jnp.float32)
    p["scale_c"], p["bias_c"] = bn_affine(ks[6], right_oup)
    return p


# ----------------------------------- main ----------------------------------- #

if __name__ == "__main__":
    key = jax.random.PRNGKey(0)
    kx, kp = jax.random.split(key)

    B, C, H, W = 2, 16, 8, 8                      # inp = oup = 16, stride = 1
    x = jax.random.normal(kx, (B, C, H, W), jnp.float32)
    params = init_params(kp, inp=C, oup=C, G=8)

    out = jax.jit(make_block_forward)(x, params)
    out = jax.block_until_ready(out)

    ref = reference_forward(x, params)
    assert out.shape == (B, C, H, W), out.shape
    np.testing.assert_allclose(np.asarray(out), np.asarray(ref), rtol=2e-2, atol=2e-2)

    print("KERNEL_OK")
</pallas_src>

<mosaic_0001>
module attributes {stable_mosaic.version = 11 : i64} {
  func.func @_right_branch_kernel(%arg0: i32, %arg1: memref<1x8x64xf32, #tpu.memory_space<vmem>>, %arg2: memref<8x8xf32, #tpu.memory_space<vmem>>, %arg3: memref<64x8xf32, #tpu.memory_space<vmem>>, %arg4: memref<1x8xf32, #tpu.memory_space<vmem>>, %arg5: memref<1x8xf32, #tpu.memory_space<vmem>>, %arg6: memref<9x8xf32, #tpu.memory_space<vmem>>, %arg7: memref<1x8xf32, #tpu.memory_space<vmem>>, %arg8: memref<1x8xf32, #tpu.memory_space<vmem>>, %arg9: memref<64x8xf32, #tpu.memory_space<vmem>>, %arg10: memref<1x8xf32, #tpu.memory_space<vmem>>, %arg11: memref<1x8xf32, #tpu.memory_space<vmem>>, %arg12: memref<1x8x64xf32, #tpu.memory_space<vmem>>, %arg13: memref<10x10x8xf32, #tpu.memory_space<vmem>>) attributes {dimension_semantics = [#tpu.dimension_semantics<parallel>], iteration_bounds = array<i64: 2>, scalar_prefetch = 0 : i64, scratch_operands = 1 : i64, tpu.core_type = #tpu.core_type<tc>, window_params = [{transform_indices = @transform_0, window_bounds = array<i64: 1, 8, 64>}, {pipeline_mode = #tpu.pipeline_mode<synchronous>, transform_indices = @transform_1, window_bounds = array<i64: 8, 8>}, {pipeline_mode = #tpu.pipeline_mode<synchronous>, transform_indices = @transform_2, window_bounds = array<i64: 64, 8>}, {pipeline_mode = #tpu.pipeline_mode<synchronous>, transform_indices = @transform_3, window_bounds = array<i64: 1, 8>}, {pipeline_mode = #tpu.pipeline_mode<synchronous>, transform_indices = @transform_4, window_bounds = array<i64: 1, 8>}, {pipeline_mode = #tpu.pipeline_mode<synchronous>, transform_indices = @transform_5, window_bounds = array<i64: 9, 8>}, {pipeline_mode = #tpu.pipeline_mode<synchronous>, transform_indices = @transform_6, window_bounds = array<i64: 1, 8>}, {pipeline_mode = #tpu.pipeline_mode<synchronous>, transform_indices = @transform_7, window_bounds = array<i64: 1, 8>}, {pipeline_mode = #tpu.pipeline_mode<synchronous>, transform_indices = @transform_8, window_bounds = array<i64: 64, 8>}, {pipeline_mode = #tpu.pipeline_mode<synchronous>, transform_indices = @transform_9, window_bounds = array<i64: 1, 8>}, {pipeline_mode = #tpu.pipeline_mode<synchronous>, transform_indices = @transform_10, window_bounds = array<i64: 1, 8>}, {transform_indices = @transform_11, window_bounds = array<i64: 1, 8, 64>}]} {
    %c0 = arith.constant 0 : index
    %c0_0 = arith.constant 0 : index
    %c0_1 = arith.constant 0 : index
    %0 = vector.load %arg1[%c0, %c0_0, %c0_1] : memref<1x8x64xf32, #tpu.memory_space<vmem>>, vector<1x8x64xf32>
    %1 = vector.shape_cast %0 : vector<1x8x64xf32> to vector<8x64xf32>
    %2 = tpu.transpose %1, [1, 0] : vector<8x64xf32> -> vector<64x8xf32>
    %c0_2 = arith.constant 0 : index
    %c0_3 = arith.constant 0 : index
    %3 = vector.load %arg2[%c0_2, %c0_3] : memref<8x8xf32, #tpu.memory_space<vmem>>, vector<8x8xf32>
    %cst = arith.constant dense<0.000000e+00> : vector<64x8xf32>
    %4 = tpu.matmul %2, %3, %cst {dimension_numbers = #tpu.dot_dimension_numbers<[1], [0], [0], [1], [0, 0, 1, 1], [], []>} : vector<64x8xf32>, vector<8x8xf32>, vector<64x8xf32> -> vector<64x8xf32>
    %5 = tpu.iota {dimensions = array<i32: 1>} : vector<64x8xi32>
    %cst_4 = arith.constant dense<0xFF800000> : vector<64xf32>
    %6 = vector.multi_reduction <maximumf>, %4, %cst_4 [1] : vector<64x8xf32> to vector<64xf32>
    %7 = vector.shape_cast %6 : vector<64xf32> to vector<64x1xf32>
    %8 = vector.broadcast %7 : vector<64x1xf32> to vector<64x8xf32>
    %9 = arith.cmpf oge, %4, %8 : vector<64x8xf32>
    %c8_i32 = arith.constant 8 : i32
    %10 = vector.broadcast %c8_i32 : i32 to vector<64x8xi32>
    %11 = arith.select %9, %5, %10 : vector<64x8xi1>, vector<64x8xi32>
    %cst_5 = arith.constant dense<2147483647> : vector<64xi32>
    %12 = vector.multi_reduction <minsi>, %11, %cst_5 [1] : vector<64x8xi32> to vector<64xi32>
    %13 = vector.shape_cast %12 : vector<64xi32> to vector<64x1xi32>
    %14 = tpu.iota {dimensions = array<i32: 1>} : vector<8x64xi32>
    %15 = tpu.iota {dimensions = array<i32: 0>} : vector<8x64xi32>
    %c8_i32_6 = arith.constant 8 : i32
    %c0_i32 = arith.constant 0 : i32
    %16 = arith.cmpi eq, %c8_i32_6, %c0_i32 : i32
    %c1_i32 = arith.constant 1 : i32
    %17 = arith.select %16, %c1_i32, %c8_i32_6 : i32
    %18 = vector.broadcast %17 : i32 to vector<8x64xi32>
    %19 = arith.remsi %14, %18 : vector<8x64xi32>
    %c0_i32_7 = arith.constant 0 : i32
    %20 = vector.broadcast %c0_i32_7 : i32 to vector<8x64xi32>
    %21 = arith.cmpi ne, %19, %20 : vector<8x64xi32>
    %c0_i32_8 = arith.constant 0 : i32
    %22 = vector.broadcast %c0_i32_8 : i32 to vector<8x64xi32>
    %23 = arith.cmpi slt, %19, %22 : vector<8x64xi32>
    %c0_i32_9 = arith.constant 0 : i32
    %24 = arith.cmpi slt, %17, %c0_i32_9 : i32
    %25 = vector.broadcast %24 : i1 to vector<8x64xi1>
    %26 = vector.broadcast %25 : vector<8x64xi1> to vector<8x64xi1>
    %27 = arith.xori %23, %26 : vector<8x64xi1>
    %28 = arith.andi %27, %21 : vector<8x64xi1>
    %29 = vector.broadcast %17 : i32 to vector<8x64xi32>
    %30 = arith.addi %19, %29 : vector<8x64xi32>
    %31 = arith.select %28, %30, %19 : vector<8x64xi1>, vector<8x64xi32>
    %32 = arith.cmpi eq, %31, %15 : vector<8x64xi32>
    %33 = arith.extui %32 : vector<8x64xi1> to vector<8x64xi32>
    %34 = arith.sitofp %33 : vector<8x64xi32> to vector<8x64xf32>
    %cst_10 = arith.constant dense<0.000000e+00> : vector<64x64xf32>
    %35 = tpu.matmul %2, %34, %cst_10 {dimension_numbers = #tpu.dot_dimension_numbers<[1], [0], [0], [1], [0, 0, 1, 1], [], []>} : vector<64x8xf32>, vector<8x64xf32>, vector<64x64xf32> -> vector<64x64xf32>
    %36 = tpu.iota {dimensions = array<i32: 1>} : vector<64x64xi32>
    %c8_i32_11 = arith.constant 8 : i32
    %37 = vector.broadcast %c8_i32_11 : i32 to vector<64x1xi32>
    %38 = arith.muli %13, %37 : vector<64x1xi32>
    %39 = vector.broadcast %38 : vector<64x1xi32> to vector<64x64xi32>
    %40 = arith.cmpi sge, %36, %39 : vector<64x64xi32>
    %c1_i32_12 = arith.constant 1 : i32
    %41 = vector.broadcast %c1_i32_12 : i32 to vector<64x1xi32>
    %42 = arith.addi %13, %41 : vector<64x1xi32>
    %c8_i32_13 = arith.constant 8 : i32
    %43 = vector.broadcast %c8_i32_13 : i32 to vector<64x1xi32>
    %44 = arith.muli %42, %43 : vector<64x1xi32>
    %45 = vector.broadcast %44 : vector<64x1xi32> to vector<64x64xi32>
    %46 = arith.cmpi slt, %36, %45 : vector<64x64xi32>
    %47 = arith.andi %40, %46 : vector<64x64xi1>
    %cst_14 = arith.constant 0.000000e+00 : f32
    %48 = vector.broadcast %cst_14 : f32 to vector<64x64xf32>
    %49 = arith.select %47, %35, %48 : vector<64x64xi1>, vector<64x64xf32>
    %c0_15 = arith.constant 0 : index
    %c0_16 = arith.constant 0 : index
    %50 = vector.load %arg3[%c0_15, %c0_16] : memref<64x8xf32, #tpu.memory_space<vmem>>, vector<64x8xf32>
    %cst_17 = arith.constant dense<0.000000e+00> : vector<64x8xf32>
    %51 = tpu.matmul %49, %50, %cst_17 {dimension_numbers = #tpu.dot_dimension_numbers<[1], [0], [0], [1], [0, 0, 1, 1], [], []>} : vector<64x64xf32>, vector<64x8xf32>, vector<64x8xf32> -> vector<64x8xf32>
    %c0_18 = arith.constant 0 : index
    %c0_19 = arith.constant 0 : index
    %52 = vector.load %arg4[%c0_18, %c0_19] : memref<1x8xf32, #tpu.memory_space<vmem>>, vector<1x8xf32>
    %53 = vector.broadcast %52 : vector<1x8xf32> to vector<64x8xf32>
    %54 = arith.mulf %51, %53 : vector<64x8xf32>
    %c0_20 = arith.constant 0 : index
    %c0_21 = arith.constant 0 : index
    %55 = vector.load %arg5[%c0_20, %c0_21] : memref<1x8xf32, #tpu.memory_space<vmem>>, vector<1x8xf32>
    %56 = vector.broadcast %55 : vector<1x8xf32> to vector<64x8xf32>
    %57 = arith.addf %54, %56 : vector<64x8xf32>
    %cst_22 = arith.constant 0.000000e+00 : f32
    %58 = vector.broadcast %cst_22 : f32 to vector<64x8xf32>
    %59 = arith.maximumf %57, %58 : vector<64x8xf32>
    %cst_23 = arith.constant 0.000000e+00 : f32
    %60 = vector.broadcast %cst_23 : f32 to vector<10x10x8xf32>
    %c0_24 = arith.constant 0 : index
    %c0_25 = arith.constant 0 : index
    %c0_26 = arith.constant 0 : index
    %61 = vector.load %arg13[%c0_24, %c0_25, %c0_26] : memref<10x10x8xf32, #tpu.memory_space<vmem>>, vector<10x10x8xf32>
    tpu.vector_store %arg13[%c0_24, %c0_25, %c0_26], %60 {strides = array<i32>} : memref<10x10x8xf32, #tpu.memory_space<vmem>>, vector<10x10x8xf32>,
    %62 = vector.extract_strided_slice %59 {offsets = [0, 0], sizes = [8, 8], strides = [1, 1]} : vector<64x8xf32> to vector<8x8xf32>
    %c1 = arith.constant 1 : index
    %c1_27 = arith.constant 1 : index
    %c0_28 = arith.constant 0 : index
    %63 = vector.load %arg13[%c1, %c1_27, %c0_28] : memref<10x10x8xf32, #tpu.memory_space<vmem>>, vector<1x8x8xf32>
    %64 = vector.shape_cast %63 : vector<1x8x8xf32> to vector<8x8xf32>
    %65 = vector.shape_cast %62 : vector<8x8xf32> to vector<1x8x8xf32>
    tpu.vector_store %arg13[%c1, %c1_27, %c0_28], %65 {strides = array<i32>} : memref<10x10x8xf32, #tpu.memory_space<vmem>>, vector<1x8x8xf32>,
    %66 = vector.extract_strided_slice %59 {offsets = [8, 0], sizes = [8, 8], strides = [1, 1]} : vector<64x8xf32> to vector<8x8xf32>
    %c2 = arith.constant 2 : index
    %c1_29 = arith.constant 1 : index
    %c0_30 = arith.constant 0 : index
    %67 = vector.load %arg13[%c2, %c1_29, %c0_30] : memref<10x10x8xf32, #tpu.memory_space<vmem>>, vector<1x8x8xf32>
    %68 = vector.shape_cast %67 : vector<1x8x8xf32> to vector<8x8xf32>
    %69 = vector.shape_cast %66 : vector<8x8xf32> to vector<1x8x8xf32>
    tpu.vector_store %arg13[%c2, %c1_29, %c0_30], %69 {strides = array<i32>} : memref<10x10x8xf32, #tpu.memory_space<vmem>>, vector<1x8x8xf32>,
    %70 = vector.extract_strided_slice %59 {offsets = [16, 0], sizes = [8, 8], strides = [1, 1]} : vector<64x8xf32> to vector<8x8xf32>
    %c3 = arith.constant 3 : index
    %c1_31 = arith.constant 1 : index
    %c0_32 = arith.constant 0 : index
    %71 = vector.load %arg13[%c3, %c1_31, %c0_32] : memref<10x10x8xf32, #tpu.memory_space<vmem>>, vector<1x8x8xf32>
    %72 = vector.shape_cast %71 : vector<1x8x8xf32> to vector<8x8xf32>
    %73 = vector.shape_cast %70 : vector<8x8xf32> to vector<1x8x8xf32>
    tpu.vector_store %arg13[%c3, %c1_31, %c0_32], %73 {strides = array<i32>} : memref<10x10x8xf32, #tpu.memory_space<vmem>>, vector<1x8x8xf32>,
    %74 = vector.extract_strided_slice %59 {offsets = [24, 0], sizes = [8, 8], strides = [1, 1]} : vector<64x8xf32> to vector<8x8xf32>
    %c4 = arith.constant 4 : index
    %c1_33 = arith.constant 1 : index
    %c0_34 = arith.constant 0 : index
    %75 = vector.load %arg13[%c4, %c1_33, %c0_34] : memref<10x10x8xf32, #tpu.memory_space<vmem>>, vector<1x8x8xf32>
    %76 = vector.shape_cast %75 : vector<1x8x8xf32> to vector<8x8xf32>
    %77 = vector.shape_cast %74 : vector<8x8xf32> to vector<1x8x8xf32>
    tpu.vector_store %arg13[%c4, %c1_33, %c0_34], %77 {strides = array<i32>} : memref<10x10x8xf32, #tpu.memory_space<vmem>>, vector<1x8x8xf32>,
    %78 = vector.extract_strided_slice %59 {offsets = [32, 0], sizes = [8, 8], strides = [1, 1]} : vector<64x8xf32> to vector<8x8xf32>
    %c5 = arith.constant 5 : index
    %c1_35 = arith.constant 1 : index
    %c0_36 = arith.constant 0 : index
    %79 = vector.load %arg13[%c5, %c1_35, %c0_36] : memref<10x10x8xf32, #tpu.memory_space<vmem>>, vector<1x8x8xf32>
    %80 = vector.shape_cast %79 : vector<1x8x8xf32> to vector<8x8xf32>
    %81 = vector.shape_cast %78 : vector<8x8xf32> to vector<1x8x8xf32>
    tpu.vector_store %arg13[%c5, %c1_35, %c0_36], %81 {strides = array<i32>} : memref<10x10x8xf32, #tpu.memory_space<vmem>>, vector<1x8x8xf32>,
    %82 = vector.extract_strided_slice %59 {offsets = [40, 0], sizes = [8, 8], strides = [1, 1]} : vector<64x8xf32> to vector<8x8xf32>
    %c6 = arith.constant 6 : index
    %c1_37 = arith.constant 1 : index
    %c0_38 = arith.constant 0 : index
    %83 = vector.load %arg13[%c6, %c1_37, %c0_38] : memref<10x10x8xf32, #tpu.memory_space<vmem>>, vector<1x8x8xf32>
    %84 = vector.shape_cast %83 : vector<1x8x8xf32> to vector<8x8xf32>
    %85 = vector.shape_cast %82 : vector<8x8xf32> to vector<1x8x8xf32>
    tpu.vector_store %arg13[%c6, %c1_37, %c0_38], %85 {strides = array<i32>} : memref<10x10x8xf32, #tpu.memory_space<vmem>>, vector<1x8x8xf32>,
    %86 = vector.extract_strided_slice %59 {offsets = [48, 0], sizes = [8, 8], strides = [1, 1]} : vector<64x8xf32> to vector<8x8xf32>
    %c7 = arith.constant 7 : index
    %c1_39 = arith.constant 1 : index
    %c0_40 = arith.constant 0 : index
    %87 = vector.load %arg13[%c7, %c1_39, %c0_40] : memref<10x10x8xf32, #tpu.memory_space<vmem>>, vector<1x8x8xf32>
    %88 = vector.shape_cast %87 : vector<1x8x8xf32> to vector<8x8xf32>
    %89 = vector.shape_cast %86 : vector<8x8xf32> to vector<1x8x8xf32>
    tpu.vector_store %arg13[%c7, %c1_39, %c0_40], %89 {strides = array<i32>} : memref<10x10x8xf32, #tpu.memory_space<vmem>>, vector<1x8x8xf32>,
    %90 = vector.extract_strided_slice %59 {offsets = [56, 0], sizes = [8, 8], strides = [1, 1]} : vector<64x8xf32> to vector<8x8xf32>
    %c8 = arith.constant 8 : index
    %c1_41 = arith.constant 1 : index
    %c0_42 = arith.constant 0 : index
    %91 = vector.load %arg13[%c8, %c1_41, %c0_42] : memref<10x10x8xf32, #tpu.memory_space<vmem>>, vector<1x8x8xf32>
    %92 = vector.shape_cast %91 : vector<1x8x8xf32> to vector<8x8xf32>
    %93 = vector.shape_cast %90 : vector<8x8xf32> to vector<1x8x8xf32>
    tpu.vector_store %arg13[%c8, %c1_41, %c0_42], %93 {strides = array<i32>} : memref<10x10x8xf32, #tpu.memory_space<vmem>>, vector<1x8x8xf32>,
    %cst_43 = arith.constant 0.000000e+00 : f32
    %94 = vector.broadcast %cst_43 : f32 to vector<8x8x8xf32>
    %c0_44 = arith.constant 0 : index
    %c0_45 = arith.constant 0 : index
    %c0_46 = arith.constant 0 : index
    %95 = vector.load %arg13[%c0_44, %c0_45, %c0_46] : memref<10x10x8xf32, #tpu.memory_space<vmem>>, vector<8x8x8xf32>
    %c0_47 = arith.constant 0 : index
    %c0_48 = arith.constant 0 : index
    %96 = vector.load %arg6[%c0_47, %c0_48] : memref<9x8xf32, #tpu.memory_space<vmem>>, vector<1x8xf32>
    %97 = vector.shape_cast %96 : vector<1x8xf32> to vector<8xf32>
    %98 = vector.shape_cast %97 : vector<8xf32> to vector<1x1x8xf32>
    %99 = vector.broadcast %98 : vector<1x1x8xf32> to vector<8x8x8xf32>
    %100 = arith.mulf %95, %99 : vector<8x8x8xf32>
    %101 = arith.addf %94, %100 : vector<8x8x8xf32>
    %c0_49 = arith.constant 0 : index
    %c1_50 = arith.constant 1 : index
    %c0_51 = arith.constant 0 : index
    %102 = vector.load %arg13[%c0_49, %c1_50, %c0_51] : memref<10x10x8xf32, #tpu.memory_space<vmem>>, vector<8x8x8xf32>
    %c1_52 = arith.constant 1 : index
    %c0_53 = arith.constant 0 : index
    %103 = vector.load %arg6[%c1_52, %c0_53] : memref<9x8xf32, #tpu.memory_space<vmem>>, vector<1x8xf32>
    %104 = vector.shape_cast %103 : vector<1x8xf32> to vector<8xf32>
    %105 = vector.shape_cast %104 : vector<8xf32> to vector<1x1x8xf32>
    %106 = vector.broadcast %105 : vector<1x1x8xf32> to vector<8x8x8xf32>
    %107 = arith.mulf %102, %106 : vector<8x8x8xf32>
    %108 = arith.addf %101, %107 : vector<8x8x8xf32>
    %c0_54 = arith.constant 0 : index
    %c2_55 = arith.constant 2 : index
    %c0_56 = arith.constant 0 : index
    %109 = vector.load %arg13[%c0_54, %c2_55, %c0_56] : memref<10x10x8xf32, #tpu.memory_space<vmem>>, vector<8x8x8xf32>
    %c2_57 = arith.constant 2 : index
    %c0_58 = arith.constant 0 : index
    %110 = vector.load %arg6[%c2_57, %c0_58] : memref<9x8xf32, #tpu.memory_space<vmem>>, vector<1x8xf32>
    %111 = vector.shape_cast %110 : vector<1x8xf32> to vector<8xf32>
    %112 = vector.shape_cast %111 : vector<8xf32> to vector<1x1x8xf32>
    %113 = vector.broadcast %112 : vector<1x1x8xf32> to vector<8x8x8xf32>
    %114 = arith.mulf %109, %113 : vector<8x8x8xf32>
    %115 = arith.addf %108, %114 : vector<8x8x8xf32>
    %c1_59 = arith.constant 1 : index
    %c0_60 = arith.constant 0 : index
    %c0_61 = arith.constant 0 : index
    %116 = vector.load %arg13[%c1_59, %c0_60, %c0_61] : memref<10x10x8xf32, #tpu.memory_space<vmem>>, vector<8x8x8xf32>
    %c3_62 = arith.constant 3 : index
    %c0_63 = arith.constant 0 : index
    %117 = vector.load %arg6[%c3_62, %c0_63] : memref<9x8xf32, #tpu.memory_space<vmem>>, vector<1x8xf32>
    %118 = vector.shape_cast %117 : vector<1x8xf32> to vector<8xf32>
    %119 = vector.shape_cast %118 : vector<8xf32> to vector<1x1x8xf32>
    %120 = vector.broadcast %119 : vector<1x1x8xf32> to vector<8x8x8xf32>
    %121 = arith.mulf %116, %120 : vector<8x8x8xf32>
    %122 = arith.addf %115, %121 : vector<8x8x8xf32>
    %c1_64 = arith.constant 1 : index
    %c1_65 = arith.constant 1 : index
    %c0_66 = arith.constant 0 : index
    %123 = vector.load %arg13[%c1_64, %c1_65, %c0_66] : memref<10x10x8xf32, #tpu.memory_space<vmem>>, vector<8x8x8xf32>
    %c4_67 = arith.constant 4 : index
    %c0_68 = arith.constant 0 : index
    %124 = vector.load %arg6[%c4_67, %c0_68] : memref<9x8xf32, #tpu.memory_space<vmem>>, vector<1x8xf32>
    %125 = vector.shape_cast %124 : vector<1x8xf32> to vector<8xf32>
    %126 = vector.shape_cast %125 : vector<8xf32> to vector<1x1x8xf32>
    %127 = vector.broadcast %126 : vector<1x1x8xf32> to vector<8x8x8xf32>
    %128 = arith.mulf %123, %127 : vector<8x8x8xf32>
    %129 = arith.addf %122, %128 : vector<8x8x8xf32>
    %c1_69 = arith.constant 1 : index
    %c2_70 = arith.constant 2 : index
    %c0_71 = arith.constant 0 : index
    %130 = vector.load %arg13[%c1_69, %c2_70, %c0_71] : memref<10x10x8xf32, #tpu.memory_space<vmem>>, vector<8x8x8xf32>
    %c5_72 = arith.constant 5 : index
    %c0_73 = arith.constant 0 : index
    %131 = vector.load %arg6[%c5_72, %c0_73] : memref<9x8xf32, #tpu.memory_space<vmem>>, vector<1x8xf32>
    %132 = vector.shape_cast %131 : vector<1x8xf32> to vector<8xf32>
    %133 = vector.shape_cast %132 : vector<8xf32> to vector<1x1x8xf32>
    %134 = vector.broadcast %133 : vector<1x1x8xf32> to vector<8x8x8xf32>
    %135 = arith.mulf %130, %134 : vector<8x8x8xf32>
    %136 = arith.addf %129, %135 : vector<8x8x8xf32>
    %c2_74 = arith.constant 2 : index
    %c0_75 = arith.constant 0 : index
    %c0_76 = arith.constant 0 : index
    %137 = vector.load %arg13[%c2_74, %c0_75, %c0_76] : memref<10x10x8xf32, #tpu.memory_space<vmem>>, vector<8x8x8xf32>
    %c6_77 = arith.constant 6 : index
    %c0_78 = arith.constant 0 : index
    %138 = vector.load %arg6[%c6_77, %c0_78] : memref<9x8xf32, #tpu.memory_space<vmem>>, vector<1x8xf32>
    %139 = vector.shape_cast %138 : vector<1x8xf32> to vector<8xf32>
    %140 = vector.shape_cast %139 : vector<8xf32> to vector<1x1x8xf32>
    %141 = vector.broadcast %140 : vector<1x1x8xf32> to vector<8x8x8xf32>
    %142 = arith.mulf %137, %141 : vector<8x8x8xf32>
    %143 = arith.addf %136, %142 : vector<8x8x8xf32>
    %c2_79 = arith.constant 2 : index
    %c1_80 = arith.constant 1 : index
    %c0_81 = arith.constant 0 : index
    %144 = vector.load %arg13[%c2_79, %c1_80, %c0_81] : memref<10x10x8xf32, #tpu.memory_space<vmem>>, vector<8x8x8xf32>
    %c7_82 = arith.constant 7 : index
    %c0_83 = arith.constant 0 : index
    %145 = vector.load %arg6[%c7_82, %c0_83] : memref<9x8xf32, #tpu.memory_space<vmem>>, vector<1x8xf32>
    %146 = vector.shape_cast %145 : vector<1x8xf32> to vector<8xf32>
    %147 = vector.shape_cast %146 : vector<8xf32> to vector<1x1x8xf32>
    %148 = vector.broadcast %147 : vector<1x1x8xf32> to vector<8x8x8xf32>
    %149 = arith.mulf %144, %148 : vector<8x8x8xf32>
    %150 = arith.addf %143, %149 : vector<8x8x8xf32>
    %c2_84 = arith.constant 2 : index
    %c2_85 = arith.constant 2 : index
    %c0_86 = arith.constant 0 : index
    %151 = vector.load %arg13[%c2_84, %c2_85, %c0_86] : memref<10x10x8xf32, #tpu.memory_space<vmem>>, vector<8x8x8xf32>
    %c8_87 = arith.constant 8 : index
    %c0_88 = arith.constant 0 : index
    %152 = vector.load %arg6[%c8_87, %c0_88] : memref<9x8xf32, #tpu.memory_space<vmem>>, vector<1x8xf32>
    %153 = vector.shape_cast %152 : vector<1x8xf32> to vector<8xf32>
    %154 = vector.shape_cast %153 : vector<8xf32> to vector<1x1x8xf32>
    %155 = vector.broadcast %154 : vector<1x1x8xf32> to vector<8x8x8xf32>
    %156 = arith.mulf %151, %155 : vector<8x8x8xf32>
    %157 = arith.addf %150, %156 : vector<8x8x8xf32>
    %c0_89 = arith.constant 0 : index
    %c0_90 = arith.constant 0 : index
    %158 = vector.load %arg7[%c0_89, %c0_90] : memref<1x8xf32, #tpu.memory_space<vmem>>, vector<1x8xf32>
    %159 = vector.shape_cast %158 : vector<1x8xf32> to vector<1x1x8xf32>
    %160 = vector.broadcast %159 : vector<1x1x8xf32> to vector<8x8x8xf32>
    %161 = arith.mulf %157, %160 : vector<8x8x8xf32>
    %c0_91 = arith.constant 0 : index
    %c0_92 = arith.constant 0 : index
    %162 = vector.load %arg8[%c0_91, %c0_92] : memref<1x8xf32, #tpu.memory_space<vmem>>, vector<1x8xf32>
    %163 = vector.shape_cast %162 : vector<1x8xf32> to vector<1x1x8xf32>
    %164 = vector.broadcast %163 : vector<1x1x8xf32> to vector<8x8x8xf32>
    %165 = arith.addf %161, %164 : vector<8x8x8xf32>
    %166 = vector.extract_strided_slice %165 {offsets = [0, 0, 0], sizes = [1, 8, 8], strides = [1, 1, 1]} : vector<8x8x8xf32> to vector<1x8x8xf32>
    %167 = vector.shape_cast %166 : vector<1x8x8xf32> to vector<8x8xf32>
    %168 = vector.extract_strided_slice %165 {offsets = [1, 0, 0], sizes = [1, 8, 8], strides = [1, 1, 1]} : vector<8x8x8xf32> to vector<1x8x8xf32>
    %169 = vector.shape_cast %168 : vector<1x8x8xf32> to vector<8x8xf32>
    %170 = vector.extract_strided_slice %165 {offsets = [2, 0, 0], sizes = [1, 8, 8], strides = [1, 1, 1]} : vector<8x8x8xf32> to vector<1x8x8xf32>
    %171 = vector.shape_cast %170 : vector<1x8x8xf32> to vector<8x8xf32>
    %172 = vector.extract_strided_slice %165 {offsets = [3, 0, 0], sizes = [1, 8, 8], strides = [1, 1, 1]} : vector<8x8x8xf32> to vector<1x8x8xf32>
    %173 = vector.shape_cast %172 : vector<1x8x8xf32> to vector<8x8xf32>
    %174 = vector.extract_strided_slice %165 {offsets = [4, 0, 0], sizes = [1, 8, 8], strides = [1, 1, 1]} : vector<8x8x8xf32> to vector<1x8x8xf32>
    %175 = vector.shape_cast %174 : vector<1x8x8xf32> to vector<8x8xf32>
    %176 = vector.extract_strided_slice %165 {offsets = [5, 0, 0], sizes = [1, 8, 8], strides = [1, 1, 1]} : vector<8x8x8xf32> to vector<1x8x8xf32>
    %177 = vector.shape_cast %176 : vector<1x8x8xf32> to vector<8x8xf32>
    %178 = vector.extract_strided_slice %165 {offsets = [6, 0, 0], sizes = [1, 8, 8], strides = [1, 1, 1]} : vector<8x8x8xf32> to vector<1x8x8xf32>
    %179 = vector.shape_cast %178 : vector<1x8x8xf32> to vector<8x8xf32>
    %180 = vector.extract_strided_slice %165 {offsets = [7, 0, 0], sizes = [1, 8, 8], strides = [1, 1, 1]} : vector<8x8x8xf32> to vector<1x8x8xf32>
    %181 = vector.shape_cast %180 : vector<1x8x8xf32> to vector<8x8xf32>
    %182 = tpu.concatenate %167, %169, %171, %173, %175, %177, %179, %181 in 0 : vector<8x8xf32>, vector<8x8xf32>, vector<8x8xf32>, vector<8x8xf32>, vector<8x8xf32>, vector<8x8xf32>, vector<8x8xf32>, vector<8x8xf32> -> vector<64x8xf32>
    %183 = tpu.iota {dimensions = array<i32: 1>} : vector<8x64xi32>
    %184 = tpu.iota {dimensions = array<i32: 0>} : vector<8x64xi32>
    %c8_i32_93 = arith.constant 8 : i32
    %c0_i32_94 = arith.constant 0 : i32
    %185 = arith.cmpi eq, %c8_i32_93, %c0_i32_94 : i32
    %c1_i32_95 = arith.constant 1 : i32
    %186 = arith.select %185, %c1_i32_95, %c8_i32_93 : i32
    %187 = vector.broadcast %186 : i32 to vector<8x64xi32>
    %188 = arith.remsi %183, %187 : vector<8x64xi32>
    %c0_i32_96 = arith.constant 0 : i32
    %189 = vector.broadcast %c0_i32_96 : i32 to vector<8x64xi32>
    %190 = arith.cmpi ne, %188, %189 : vector<8x64xi32>
    %c0_i32_97 = arith.constant 0 : i32
    %191 = vector.broadcast %c0_i32_97 : i32 to vector<8x64xi32>
    %192 = arith.cmpi slt, %188, %191 : vector<8x64xi32>
    %c0_i32_98 = arith.constant 0 : i32
    %193 = arith.cmpi slt, %186, %c0_i32_98 : i32
    %194 = vector.broadcast %193 : i1 to vector<8x64xi1>
    %195 = vector.broadcast %194 : vector<8x64xi1> to vector<8x64xi1>
    %196 = arith.xori %192, %195 : vector<8x64xi1>
    %197 = arith.andi %196, %190 : vector<8x64xi1>
    %198 = vector.broadcast %186 : i32 to vector<8x64xi32>
    %199 = arith.addi %188, %198 : vector<8x64xi32>
    %200 = arith.select %197, %199, %188 : vector<8x64xi1>, vector<8x64xi32>
    %201 = arith.cmpi eq, %200, %184 : vector<8x64xi32>
    %202 = arith.extui %201 : vector<8x64xi1> to vector<8x64xi32>
    %203 = arith.sitofp %202 : vector<8x64xi32> to vector<8x64xf32>
    %cst_99 = arith.constant dense<0.000000e+00> : vector<64x64xf32>
    %204 = tpu.matmul %182, %203, %cst_99 {dimension_numbers = #tpu.dot_dimension_numbers<[1], [0], [0], [1], [0, 0, 1, 1], [], []>} : vector<64x8xf32>, vector<8x64xf32>, vector<64x64xf32> -> vector<64x64xf32>
    %205 = tpu.iota {dimensions = array<i32: 1>} : vector<64x64xi32>
    %c8_i32_100 = arith.constant 8 : i32
    %206 = vector.broadcast %c8_i32_100 : i32 to vector<64x1xi32>
    %207 = arith.muli %13, %206 : vector<64x1xi32>
    %208 = vector.broadcast %207 : vector<64x1xi32> to vector<64x64xi32>
    %209 = arith.cmpi sge, %205, %208 : vector<64x64xi32>
    %c1_i32_101 = arith.constant 1 : i32
    %210 = vector.broadcast %c1_i32_101 : i32 to vector<64x1xi32>
    %211 = arith.addi %13, %210 : vector<64x1xi32>
    %c8_i32_102 = arith.constant 8 : i32
    %212 = vector.broadcast %c8_i32_102 : i32 to vector<64x1xi32>
    %213 = arith.muli %211, %212 : vector<64x1xi32>
    %214 = vector.broadcast %213 : vector<64x1xi32> to vector<64x64xi32>
    %215 = arith.cmpi slt, %205, %214 : vector<64x64xi32>
    %216 = arith.andi %209, %215 : vector<64x64xi1>
    %cst_103 = arith.constant 0.000000e+00 : f32
    %217 = vector.broadcast %cst_103 : f32 to vector<64x64xf32>
    %218 = arith.select %216, %204, %217 : vector<64x64xi1>, vector<64x64xf32>
    %c0_104 = arith.constant 0 : index
    %c0_105 = arith.constant 0 : index
    %219 = vector.load %arg9[%c0_104, %c0_105] : memref<64x8xf32, #tpu.memory_space<vmem>>, vector<64x8xf32>
    %cst_106 = arith.constant dense<0.000000e+00> : vector<64x8xf32>
    %220 = tpu.matmul %218, %219, %cst_106 {dimension_numbers = #tpu.dot_dimension_numbers<[1], [0], [0], [1], [0, 0, 1, 1], [], []>} : vector<64x64xf32>, vector<64x8xf32>, vector<64x8xf32> -> vector<64x8xf32>
    %c0_107 = arith.constant 0 : index
    %c0_108 = arith.constant 0 : index
    %221 = vector.load %arg10[%c0_107, %c0_108] : memref<1x8xf32, #tpu.memory_space<vmem>>, vector<1x8xf32>
    %222 = vector.broadcast %221 : vector<1x8xf32> to vector<64x8xf32>
    %223 = arith.mulf %220, %222 : vector<64x8xf32>
    %c0_109 = arith.constant 0 : index
    %c0_110 = arith.constant 0 : index
    %224 = vector.load %arg11[%c0_109, %c0_110] : memref<1x8xf32, #tpu.memory_space<vmem>>, vector<1x8xf32>
    %225 = vector.broadcast %224 : vector<1x8xf32> to vector<64x8xf32>
    %226 = arith.addf %223, %225 : vector<64x8xf32>
    %cst_111 = arith.constant 0.000000e+00 : f32
    %227 = vector.broadcast %cst_111 : f32 to vector<64x8xf32>
    %228 = arith.maximumf %226, %227 : vector<64x8xf32>
    %229 = tpu.transpose %228, [1, 0] : vector<64x8xf32> -> vector<8x64xf32>
    %c0_112 = arith.constant 0 : index
    %c0_113 = arith.constant 0 : index
    %c0_114 = arith.constant 0 : index
    %230 = vector.load %arg12[%c0_112, %c0_113, %c0_114] : memref<1x8x64xf32, #tpu.memory_space<vmem>>, vector<1x8x64xf32>
    %231 = vector.shape_cast %230 : vector<1x8x64xf32> to vector<8x64xf32>
    %232 = vector.shape_cast %229 : vector<8x64xf32> to vector<1x8x64xf32>
    tpu.vector_store %arg12[%c0_112, %c0_113, %c0_114], %232 {strides = array<i32>} : memref<1x8x64xf32, #tpu.memory_space<vmem>>, vector<1x8x64xf32>,
    return
  }
  func.func @transform_0(%arg0: i32) -> (i32, i32, i32) {
    %c0_i32 = arith.constant 0 : i32
    %c0_i32_0 = arith.constant 0 : i32
    %c0_i32_1 = arith.constant 0 : i32
    return %arg0, %c0_i32, %c0_i32_0 : i32, i32, i32
  }
  func.func @transform_1(%arg0: i32) -> (i32, i32) {
    %c0_i32 = arith.constant 0 : i32
    %c0_i32_0 = arith.constant 0 : i32
    %c0_i32_1 = arith.constant 0 : i32
    return %c0_i32, %c0_i32_0 : i32, i32
  }
  func.func @transform_2(%arg0: i32) -> (i32, i32) {
    %c0_i32 = arith.constant 0 : i32
    %c0_i32_0 = arith.constant 0 : i32
    %c0_i32_1 = arith.constant 0 : i32
    return %c0_i32, %c0_i32_0 : i32, i32
  }
  func.func @transform_3(%arg0: i32) -> (i32, i32) {
    %c0_i32 = arith.constant 0 : i32
    %c0_i32_0 = arith.constant 0 : i32
    %c0_i32_1 = arith.constant 0 : i32
    return %c0_i32, %c0_i32_0 : i32, i32
  }
  func.func @transform_4(%arg0: i32) -> (i32, i32) {
    %c0_i32 = arith.constant 0 : i32
    %c0_i32_0 = arith.constant 0 : i32
    %c0_i32_1 = arith.constant 0 : i32
    return %c0_i32, %c0_i32_0 : i32, i32
  }
  func.func @transform_5(%arg0: i32) -> (i32, i32) {
    %c0_i32 = arith.constant 0 : i32
    %c0_i32_0 = arith.constant 0 : i32
    %c0_i32_1 = arith.constant 0 : i32
    return %c0_i32, %c0_i32_0 : i32, i32
  }
  func.func @transform_6(%arg0: i32) -> (i32, i32) {
    %c0_i32 = arith.constant 0 : i32
    %c0_i32_0 = arith.constant 0 : i32
    %c0_i32_1 = arith.constant 0 : i32
    return %c0_i32, %c0_i32_0 : i32, i32
  }
  func.func @transform_7(%arg0: i32) -> (i32, i32) {
    %c0_i32 = arith.constant 0 : i32
    %c0_i32_0 = arith.constant 0 : i32
    %c0_i32_1 = arith.constant 0 : i32
    return %c0_i32, %c0_i32_0 : i32, i32
  }
  func.func @transform_8(%arg0: i32) -> (i32, i32) {
    %c0_i32 = arith.constant 0 : i32
    %c0_i32_0 = arith.constant 0 : i32
    %c0_i32_1 = arith.constant 0 : i32
    return %c0_i32, %c0_i32_0 : i32, i32
  }
  func.func @transform_9(%arg0: i32) -> (i32, i32) {
    %c0_i32 = arith.constant 0 : i32
    %c0_i32_0 = arith.constant 0 : i32
    %c0_i32_1 = arith.constant 0 : i32
    return %c0_i32, %c0_i32_0 : i32, i32
  }
  func.func @transform_10(%arg0: i32) -> (i32, i32) {
    %c0_i32 = arith.constant 0 : i32
    %c0_i32_0 = arith.constant 0 : i32
    %c0_i32_1 = arith.constant 0 : i32
    return %c0_i32, %c0_i32_0 : i32, i32
  }
  func.func @transform_11(%arg0: i32) -> (i32, i32, i32) {
    %c0_i32 = arith.constant 0 : i32
    %c0_i32_0 = arith.constant 0 : i32
    %c0_i32_1 = arith.constant 0 : i32
    return %arg0, %c0_i32, %c0_i32_0 : i32, i32, i32
  }
}

</mosaic_0001>

<llo_original>
// kernel: make_block_forward.1
$region0: #{make_block_forward.1}
  #allocation0 [shape = 'u32[]', space=smem, size = 0x4, offset = 0x4, fixed_abs, tag = 'smem constant byte address 0x4 - core index']
  #allocation1 [shape = 'u32[144,128]{1,0:T(1,128)}', space=vmem, size = 0x12000, scoped, tag = 'internal scratch']
  #allocation2 [shape = 'f32[10,10,8]{2,1,0:T(8,128)}', space=vmem, size = 0x14000, scoped, tag = 'scratch operand']
  %s0 = inlined_call_operand.vmem [shape: f32[2,8,64], index: 0, kind: input, shape index: {}]
  %s1 = inlined_call_operand.vmem [shape: f32[8,8], index: 1, kind: input, shape index: {}]
  %s2 = inlined_call_operand.vmem [shape: f32[64,8], index: 2, kind: input, shape index: {}]
  %s3 = inlined_call_operand.vmem [shape: f32[1,8], index: 3, kind: input, shape index: {}]
  %s4 = inlined_call_operand.vmem [shape: f32[1,8], index: 4, kind: input, shape index: {}]
  %s5 = inlined_call_operand.vmem [shape: f32[9,8], index: 5, kind: input, shape index: {}]
  %s6 = inlined_call_operand.vmem [shape: f32[1,8], index: 6, kind: input, shape index: {}]
  %s7 = inlined_call_operand.vmem [shape: f32[1,8], index: 7, kind: input, shape index: {}]
  %s8 = inlined_call_operand.vmem [shape: f32[64,8], index: 8, kind: input, shape index: {}]
  %s9 = inlined_call_operand.vmem [shape: f32[1,8], index: 9, kind: input, shape index: {}]
  %s10 = inlined_call_operand.vmem [shape: f32[1,8], index: 10, kind: input, shape index: {}]
  %s11 = inlined_call_operand.vmem [shape: f32[2,8,64], index: 11, kind: output, shape index: {}]
  %s12 = sld [smem:[#allocation0]]
  $region77: #{make_block_forward.1} parent=0
    _
  %s14 = ssub.s32 1, %s12
  %s15 = scalar_select 0, %s14, %s12
  loop: start=0, step=1, limit=4
  $region2: #{make_block_forward.1} parent=0 // loop_pre_header
    _
  $region3: #{make_block_forward.1} parent=0 // loop_header
    %s17 = sphi 0, %s21
    %p18 = scmp.ge.s32.totalorder %s17, 4
    %s27 = sphi 0, %s29
    %s30 = sphi 0, %s27
    %s31 = sphi 0, %s30
    %s47 = sphi 0, %s31
    %s51 = sphi 0, %s51
    %s53 = sphi 0, %s51
    %s54 = sphi 0, %s53
    %s68 = sphi 0, %s54
    %s72 = sphi 0, %s72
    %s74 = sphi 0, %s72
    %s75 = sphi 0, %s74
    %s89 = sphi 0, %s75
    %s93 = sphi 0, %s93
    %s95 = sphi 0, %s93
    %s96 = sphi 0, %s95
    %s110 = sphi 0, %s96
    %s114 = sphi 0, %s114
    %s116 = sphi 0, %s114
    %s117 = sphi 0, %s116
    %s131 = sphi 0, %s117
    %s135 = sphi 0, %s135
    %s137 = sphi 0, %s135
    %s138 = sphi 0, %s137
    %s152 = sphi 0, %s138
    %s156 = sphi 0, %s156
    %s158 = sphi 0, %s156
    %s159 = sphi 0, %s158
    %s173 = sphi 0, %s159
    %s177 = sphi 0, %s177
    %s179 = sphi 0, %s177
    %s180 = sphi 0, %s179
    %s194 = sphi 0, %s180
    %s198 = sphi 0, %s198
    %s200 = sphi 0, %s198
    %s201 = sphi 0, %s200
    %s215 = sphi 0, %s201
    %s219 = sphi 0, %s219
    %s221 = sphi 0, %s219
    %s222 = sphi 0, %s221
    %s236 = sphi 0, %s222
    %s240 = sphi 0, %s240
    %s242 = sphi 0, %s240
    %s243 = sphi 0, %s242
    %s257 = sphi 0, %s243
    %s263 = sphi 0, %s265
    %s266 = sphi 0, %s263
    %s267 = sphi 0, %s266
    %s283 = sphi 0, %s267
  $region4: #{make_block_forward.1} parent=0 // loop_header_branch
    %20 = sbr.rel (%p18) target = $region8
  $region5: #{make_block_forward.1} parent=0 // loop_body
    %s22 = ssub.s32 %s17, 1
    %s23 = ssub.s32 %s17, 2
    %s24 = sadd.s32 %s17, 1
    %s25 = ssub.s32 %s17, %s24
    %p26 = scmp.eq.s32.totalorder %s25, 0
    %s28 = sadd.s32 %s27, 1
    %s29 = scalar_select %p26, %s27, %s28
    %p32 = pneg %p26
    %p33 = scmp.eq.s32.totalorder %s17, 1
    %p34 = por %p32, %p33
    %p35 = scmp.ne.s32.totalorder %s27, %s30
    %p36 = scmp.eq.s32.totalorder %s17, 0
    %p37 = por %p35, %p36
    %p38 = scmp.ne.s32.totalorder %s27, %s30
    %p39 = scmp.eq.s32.totalorder %s22, 1
    %p40 = por %p38, %p39
    %p41 = scmp.ne.s32.totalorder %s30, %s31
    %p42 = scmp.eq.s32.totalorder %s22, 0
    %p43 = por %p41, %p42
    %p44 = scmp.ne.s32.totalorder %s30, %s31
    %p45 = scmp.eq.s32.totalorder %s23, 1
    %p46 = por %p44, %p45
    %p48 = scmp.ne.s32.totalorder %s31, %s47
    %p49 = scmp.eq.s32.totalorder %s23, 0
    %p50 = por %p48, %p49
    %s52 = sadd.s32 %s51, 1
    %p55 = scmp.eq.s32.totalorder %s17, 1
    %p56 = scmp.ne.s32.totalorder %s51, %s53
    %p57 = scmp.eq.s32.totalorder %s17, 0
    %p58 = por %p56, %p57
    %p59 = scmp.ne.s32.totalorder %s51, %s53
    %p60 = scmp.eq.s32.totalorder %s22, 1
    %p61 = por %p59, %p60
    %p62 = scmp.ne.s32.totalorder %s53, %s54
    %p63 = scmp.eq.s32.totalorder %s22, 0
    %p64 = por %p62, %p63
    %p65 = scmp.ne.s32.totalorder %s53, %s54
    %p66 = scmp.eq.s32.totalorder %s23, 1
    %p67 = por %p65, %p66
    %p69 = scmp.ne.s32.totalorder %s54, %s68
    %p70 = scmp.eq.s32.totalorder %s23, 0
    %p71 = por %p69, %p70
    %s73 = sadd.s32 %s72, 1
    %p76 = scmp.eq.s32.totalorder %s17, 1
    %p77 = scmp.ne.s32.totalorder %s72, %s74
    %p78 = scmp.eq.s32.totalorder %s17, 0
    %p79 = por %p77, %p78
    %p80 = scmp.ne.s32.totalorder %s72, %s74
    %p81 = scmp.eq.s32.totalorder %s22, 1
    %p82 = por %p80, %p81
    %p83 = scmp.ne.s32.totalorder %s74, %s75
    %p84 = scmp.eq.s32.totalorder %s22, 0
    %p85 = por %p83, %p84
    %p86 = scmp.ne.s32.totalorder %s74, %s75
    %p87 = scmp.eq.s32.totalorder %s23, 1
    %p88 = por %p86, %p87
    %p90 = scmp.ne.s32.totalorder %s75, %s89
    %p91 = scmp.eq.s32.totalorder %s23, 0
    %p92 = por %p90, %p91
    %s94 = sadd.s32 %s93, 1
    %p97 = scmp.eq.s32.totalorder %s17, 1
    %p98 = scmp.ne.s32.totalorder %s93, %s95
    %p99 = scmp.eq.s32.totalorder %s17, 0
    %p100 = por %p98, %p99
    %p101 = scmp.ne.s32.totalorder %s93, %s95
    %p102 = scmp.eq.s32.totalorder %s22, 1
    %p103 = por %p101, %p102
    %p104 = scmp.ne.s32.totalorder %s95, %s96
    %p105 = scmp.eq.s32.totalorder %s22, 0
    %p106 = por %p104, %p105
    %p107 = scmp.ne.s32.totalorder %s95, %s96
    %p108 = scmp.eq.s32.totalorder %s23, 1
    %p109 = por %p107, %p108
    %p111 = scmp.ne.s32.totalorder %s96, %s110
    %p112 = scmp.eq.s32.totalorder %s23, 0
    %p113 = por %p111, %p112
    %s115 = sadd.s32 %s114, 1
    %p118 = scmp.eq.s32.totalorder %s17, 1
    %p119 = scmp.ne.s32.totalorder %s114, %s116
    %p120 = scmp.eq.s32.totalorder %s17, 0
    %p121 = por %p119, %p120
    %p122 = scmp.ne.s32.totalorder %s114, %s116
    %p123 = scmp.eq.s32.totalorder %s22, 1
    %p124 = por %p122, %p123
    %p125 = scmp.ne.s32.totalorder %s116, %s117
    %p126 = scmp.eq.s32.totalorder %s22, 0
    %p127 = por %p125, %p126
    %p128 = scmp.ne.s32.totalorder %s116, %s117
    %p129 = scmp.eq.s32.totalorder %s23, 1
    %p130 = por %p128, %p129
    %p132 = scmp.ne.s32.totalorder %s117, %s131
    %p133 = scmp.eq.s32.totalorder %s23, 0
    %p134 = por %p132, %p133
    %s136 = sadd.s32 %s135, 1
    %p139 = scmp.eq.s32.totalorder %s17, 1
    %p140 = scmp.ne.s32.totalorder %s135, %s137
    %p141 = scmp.eq.s32.totalorder %s17, 0
    %p142 = por %p140, %p141
    %p143 = scmp.ne.s32.totalorder %s135, %s137
    %p144 = scmp.eq.s32.totalorder %s22, 1
    %p145 = por %p143, %p144
    %p146 = scmp.ne.s32.totalorder %s137, %s138
    %p147 = scmp.eq.s32.totalorder %s22, 0
    %p148 = por %p146, %p147
    %p149 = scmp.ne.s32.totalorder %s137, %s138
    %p150 = scmp.eq.s32.totalorder %s23, 1
    %p151 = por %p149, %p150
    %p153 = scmp.ne.s32.totalorder %s138, %s152
    %p154 = scmp.eq.s32.totalorder %s23, 0
    %p155 = por %p153, %p154
    %s157 = sadd.s32 %s156, 1
    %p160 = scmp.eq.s32.totalorder %s17, 1
    %p161 = scmp.ne.s32.totalorder %s156, %s158
    %p162 = scmp.eq.s32.totalorder %s17, 0
    %p163 = por %p161, %p162
    %p164 = scmp.ne.s32.totalorder %s156, %s158
    %p165 = scmp.eq.s32.totalorder %s22, 1
    %p166 = por %p164, %p165
    %p167 = scmp.ne.s32.totalorder %s158, %s159
    %p168 = scmp.eq.s32.totalorder %s22, 0
    %p169 = por %p167, %p168
    %p170 = scmp.ne.s32.totalorder %s158, %s159
    %p171 = scmp.eq.s32.totalorder %s23, 1
    %p172 = por %p170, %p171
    %p174 = scmp.ne.s32.totalorder %s159, %s173
    %p175 = scmp.eq.s32.totalorder %s23, 0
    %p176 = por %p174, %p175
    %s178 = sadd.s32 %s177, 1
    %p181 = scmp.eq.s32.totalorder %s17, 1
    %p182 = scmp.ne.s32.totalorder %s177, %s179
    %p183 = scmp.eq.s32.totalorder %s17, 0
    %p184 = por %p182, %p183
    %p185 = scmp.ne.s32.totalorder %s177, %s179
    %p186 = scmp.eq.s32.totalorder %s22, 1
    %p187 = por %p185, %p186
    %p188 = scmp.ne.s32.totalorder %s179, %s180
    %p189 = scmp.eq.s32.totalorder %s22, 0
    %p190 = por %p188, %p189
    %p191 = scmp.ne.s32.totalorder %s179, %s180
    %p192 = scmp.eq.s32.totalorder %s23, 1
    %p193 = por %p191, %p192
    %p195 = scmp.ne.s32.totalorder %s180, %s194
    %p196 = scmp.eq.s32.totalorder %s23, 0
    %p197 = por %p195, %p196
    %s199 = sadd.s32 %s198, 1
    %p202 = scmp.eq.s32.totalorder %s17, 1
    %p203 = scmp.ne.s32.totalorder %s198, %s200
    %p204 = scmp.eq.s32.totalorder %s17, 0
    %p205 = por %p203, %p204
    %p206 = scmp.ne.s32.totalorder %s198, %s200
    %p207 = scmp.eq.s32.totalorder %s22, 1
    %p208 = por %p206, %p207
    %p209 = scmp.ne.s32.totalorder %s200, %s201
    %p210 = scmp.eq.s32.totalorder %s22, 0
    %p211 = por %p209, %p210
    %p212 = scmp.ne.s32.totalorder %s200, %s201
    %p213 = scmp.eq.s32.totalorder %s23, 1
    %p214 = por %p212, %p213
    %p216 = scmp.ne.s32.totalorder %s201, %s215
    %p217 = scmp.eq.s32.totalorder %s23, 0
    %p218 = por %p216, %p217
    %s220 = sadd.s32 %s219, 1
    %p223 = scmp.eq.s32.totalorder %s17, 1
    %p224 = scmp.ne.s32.totalorder %s219, %s221
    %p225 = scmp.eq.s32.totalorder %s17, 0
    %p226 = por %p224, %p225
    %p227 = scmp.ne.s32.totalorder %s219, %s221
    %p228 = scmp.eq.s32.totalorder %s22, 1
    %p229 = por %p227, %p228
    %p230 = scmp.ne.s32.totalorder %s221, %s222
    %p231 = scmp.eq.s32.totalorder %s22, 0
    %p232 = por %p230, %p231
    %p233 = scmp.ne.s32.totalorder %s221, %s222
    %p234 = scmp.eq.s32.totalorder %s23, 1
    %p235 = por %p233, %p234
    %p237 = scmp.ne.s32.totalorder %s222, %s236
    %p238 = scmp.eq.s32.totalorder %s23, 0
    %p239 = por %p237, %p238
    %s241 = sadd.s32 %s240, 1
    %p244 = scmp.eq.s32.totalorder %s17, 1
    %p245 = scmp.ne.s32.totalorder %s240, %s242
    %p246 = scmp.eq.s32.totalorder %s17, 0
    %p247 = por %p245, %p246
    %p248 = scmp.ne.s32.totalorder %s240, %s242
    %p249 = scmp.eq.s32.totalorder %s22, 1
    %p250 = por %p248, %p249
    %p251 = scmp.ne.s32.totalorder %s242, %s243
    %p252 = scmp.eq.s32.totalorder %s22, 0
    %p253 = por %p251, %p252
    %p254 = scmp.ne.s32.totalorder %s242, %s243
    %p255 = scmp.eq.s32.totalorder %s23, 1
    %p256 = por %p254, %p255
    %p258 = scmp.ne.s32.totalorder %s243, %s257
    %p259 = scmp.eq.s32.totalorder %s23, 0
    %p260 = por %p258, %p259
    %s261 = ssub.s32 %s17, %s24
    %p262 = scmp.eq.s32.totalorder %s261, 0
    %s264 = sadd.s32 %s263, 1
    %s265 = scalar_select %p262, %s263, %s264
    %p268 = pneg %p262
    %p269 = scmp.eq.s32.totalorder %s17, 1
    %p270 = por %p268, %p269
    %p271 = scmp.ne.s32.totalorder %s263, %s266
    %p272 = scmp.eq.s32.totalorder %s17, 0
    %p273 = por %p271, %p272
    %p274 = scmp.ne.s32.totalorder %s263, %s266
    %p275 = scmp.eq.s32.totalorder %s22, 1
    %p276 = por %p274, %p275
    %p277 = scmp.ne.s32.totalorder %s266, %s267
    %p278 = scmp.eq.s32.totalorder %s22, 0
    %p279 = por %p277, %p278
    %p280 = scmp.ne.s32.totalorder %s266, %s267
    %p281 = scmp.eq.s32.totalorder %s23, 1
    %p282 = por %p280, %p281
    %p284 = scmp.ne.s32.totalorder %s267, %s283
    %p285 = scmp.eq.s32.totalorder %s23, 0
    %p286 = por %p284, %p285
    %p287 = scmp.le.s32.totalorder 1, %s17
    %p288 = scmp.lt.s32.totalorder %s17, 3
    %p289 = pnand %p287, %p288
    %p290 = pneg %p289
    // Predicated region
    $region9: #{make_block_forward.1} parent=5 // pred_check
      _
    $region10: #{make_block_forward.1} parent=5 // pred_check_branch
      %292 = sbr.rel (%p289) target = $region12
    $region11: #{make_block_forward.1} parent=5 // pred_region
      %s293 = ssub.s32 %s17, 1
      // Predicated region
      $region13: #{make_block_forward.1} parent=11 // pred_check
        %p294 = pneg %p64
      $region14: #{make_block_forward.1} parent=11 // pred_check_branch
        %296 = sbr.rel (%p294) target = $region16
      $region15: #{make_block_forward.1} parent=11 // pred_region
        _
      $region16: #{make_block_forward.1} parent=11 // pred_fallthru
        _
      // Predicated region
      $region17: #{make_block_forward.1} parent=11 // pred_check
        %p297 = pneg %p85
      $region18: #{make_block_forward.1} parent=11 // pred_check_branch
        %299 = sbr.rel (%p297) target = $region20
      $region19: #{make_block_forward.1} parent=11 // pred_region
        _
      $region20: #{make_block_forward.1} parent=11 // pred_fallthru
        _
      // Predicated region
      $region21: #{make_block_forward.1} parent=11 // pred_check
        %p300 = pneg %p106
      $region22: #{make_block_forward.1} parent=11 // pred_check_branch
        %302 = sbr.rel (%p300) target = $region24
      $region23: #{make_block_forward.1} parent=11 // pred_region
        _
      $region24: #{make_block_forward.1} parent=11 // pred_fallthru
        _
      // Predicated region
      $region25: #{make_block_forward.1} parent=11 // pred_check
        %p303 = pneg %p127
      $region26: #{make_block_forward.1} parent=11 // pred_check_branch
        %305 = sbr.rel (%p303) target = $region28
      $region27: #{make_block_forward.1} parent=11 // pred_region
        _
      $region28: #{make_block_forward.1} parent=11 // pred_fallthru
        _
      // Predicated region
      $region29: #{make_block_forward.1} parent=11 // pred_check
        %p306 = pneg %p148
      $region30: #{make_block_forward.1} parent=11 // pred_check_branch
        %308 = sbr.rel (%p306) target = $region32
      $region31: #{make_block_forward.1} parent=11 // pred_region
        _
      $region32: #{make_block_forward.1} parent=11 // pred_fallthru
        _
      // Predicated region
      $region33: #{make_block_forward.1} parent=11 // pred_check
        %p309 = pneg %p169
      $region34: #{make_block_forward.1} parent=11 // pred_check_branch
        %311 = sbr.rel (%p309) target = $region36
      $region35: #{make_block_forward.1} parent=11 // pred_region
        _
      $region36: #{make_block_forward.1} parent=11 // pred_fallthru
        _
      // Predicated region
      $region37: #{make_block_forward.1} parent=11 // pred_check
        %p312 = pneg %p190
      $region38: #{make_block_forward.1} parent=11 // pred_check_branch
        %314 = sbr.rel (%p312) target = $region40
      $region39: #{make_block_forward.1} parent=11 // pred_region
        _
      $region40: #{make_block_forward.1} parent=11 // pred_fallthru
        _
      // Predicated region
      $region41: #{make_block_forward.1} parent=11 // pred_check
        %p315 = pneg %p211
      $region42: #{make_block_forward.1} parent=11 // pred_check_branch
        %317 = sbr.rel (%p315) target = $region44
      $region43: #{make_block_forward.1} parent=11 // pred_region
        _
      $region44: #{make_block_forward.1} parent=11 // pred_fallthru
        _
      // Predicated region
      $region45: #{make_block_forward.1} parent=11 // pred_check
        %p318 = pneg %p232
      $region46: #{make_block_forward.1} parent=11 // pred_check_branch
        %320 = sbr.rel (%p318) target = $region48
      $region47: #{make_block_forward.1} parent=11 // pred_region
        _
      $region48: #{make_block_forward.1} parent=11 // pred_fallthru
        _
      // Predicated region
      $region49: #{make_block_forward.1} parent=11 // pred_check
        %p321 = pneg %p253
      $region50: #{make_block_forward.1} parent=11 // pred_check_branch
        %323 = sbr.rel (%p321) target = $region52
      $region51: #{make_block_forward.1} parent=11 // pred_region
        _
      $region52: #{make_block_forward.1} parent=11 // pred_fallthru
        _
    $region12: #{make_block_forward.1} parent=5 // pred_fallthru
      _
    %p324 = scmp.lt.s32.totalorder %s17, 2
    // Predicated region
    $region53: #{make_block_forward.1} parent=5 // pred_check
      %p325 = pneg %p324
    $region54: #{make_block_forward.1} parent=5 // pred_check_branch
      %327 = sbr.rel (%p325) target = $region56
    $region55: #{make_block_forward.1} parent=5 // pred_region
      // Predicated region
      $region57: #{make_block_forward.1} parent=55 // pred_check
        %p328 = pneg %p37
      $region58: #{make_block_forward.1} parent=55 // pred_check_branch
        %330 = sbr.rel (%p328) target = $region60
      $region59: #{make_block_forward.1} parent=55 // pred_region
        %p331 = scmp.lt.s32.totalorder %s17, 1
        %s332 = scalar_select %p331, %s17, 1
        %s333 = smul.addr %s332, 8
        %s334 = scalar_lea.vmem %s0, %s333
      $region60: #{make_block_forward.1} parent=55 // pred_fallthru
        _
    $region56: #{make_block_forward.1} parent=5 // pred_fallthru
      _
    %p335 = scmp.le.s32.totalorder 1, %s17
    %p336 = scmp.lt.s32.totalorder %s17, 3
    %p337 = pnand %p335, %p336
    %p338 = pneg %p337
    // Predicated region
    $region61: #{make_block_forward.1} parent=5 // pred_check
      _
    $region62: #{make_block_forward.1} parent=5 // pred_check_branch
      %340 = sbr.rel (%p337) target = $region64
    $region63: #{make_block_forward.1} parent=5 // pred_region
      %s341 = ssub.s32 %s17, 1
      %p342 = scmp.lt.s32.totalorder %s22, 1
      %s343 = scalar_select %p342, %s22, 1
      %s344 = smul.addr %s343, 8
      %s345 = scalar_lea.vmem %s0, %s344
      %p346 = pneg %p43
      %p347 = pneg %p40
      %p348 = pneg %p64
      %p349 = pneg %p61
      %p350 = pneg %p85
      %p351 = pneg %p82
      %p352 = pneg %p106
      %p353 = pneg %p103
      %p354 = pneg %p127
      %p355 = pneg %p124
      %p356 = pneg %p148
      %p357 = pneg %p145
      %p358 = pneg %p169
      %p359 = pneg %p166
      %p360 = pneg %p190
      %p361 = pneg %p187
      %p362 = pneg %p211
      %p363 = pneg %p208
      %p364 = pneg %p232
      %p365 = pneg %p229
      %p366 = pneg %p253
      %p367 = pneg %p250
      %p368 = pneg %p279
      %p369 = pneg %p276
      %p370 = scmp.lt.s32.totalorder %s22, 1
      %s371 = scalar_select %p370, %s22, 1
      %s372 = smul.addr %s371, 8
      %s373 = scalar_lea.vmem %s11, %s372
      %p374 = scmp.lt.s32.totalorder %s22, 1
      %s375 = scalar_select %p374, %s22, 1
      %s376 = smul.addr %s375, 8
      %s377 = scalar_lea.vmem %s0, %s376
      %p378 = scmp.lt.s32.totalorder %s22, 1
      %s379 = scalar_select %p378, %s22, 1
      %s380 = smul.addr %s379, 8
      %s381 = scalar_lea.vmem %s11, %s380
      %v382 = vld [vmem:[%s377] sm:$0xff]
      %383 = vxpose.xlu0.b32.start [1/16] %v382, 128
      %384 = vxpose.xlu0.b32.cont [2/16] 0.0, 128
      %385 = vxpose.xlu0.b32.cont [3/16] 0.0, 128
      %386 = vxpose.xlu0.b32.cont [4/16] 0.0, 128
      %387 = vxpose.xlu0.b32.cont [5/16] 0.0, 128
      %388 = vxpose.xlu0.b32.cont [6/16] 0.0, 128
      %389 = vxpose.xlu0.b32.cont [7/16] 0.0, 128
      %390 = vxpose.xlu0.b32.cont [8/16] 0.0, 128
      %391 = vxpose.xlu0.b32.cont [9/16] 0.0, 128
      %392 = vxpose.xlu0.b32.cont [10/16] 0.0, 128
      %393 = vxpose.xlu0.b32.cont [11/16] 0.0, 128
      %394 = vxpose.xlu0.b32.cont [12/16] 0.0, 128
      %395 = vxpose.xlu0.b32.cont [13/16] 0.0, 128
      %396 = vxpose.xlu0.b32.cont [14/16] 0.0, 128
      %397 = vxpose.xlu0.b32.cont [15/16] 0.0, 128
      %398 = vxpose.xlu0.b32.end [16/16] 0.0, 128
      %v399 = vpop.trf.xlu0
      %v400 = vpop.trf.xlu0
      %v401 = vpop.trf.xlu0
      %v402 = vpop.trf.xlu0
      %v403 = vpop.trf.xlu0
      %v404 = vpop.trf.xlu0
      %v405 = vpop.trf.xlu0
      %v406 = vpop.trf.xlu0
      %v407 = vpop.trf.xlu0
      %v408 = vpop.trf.xlu0
      %v409 = vpop.trf.xlu0
      %v410 = vpop.trf.xlu0
      %v411 = vpop.trf.xlu0
      %v412 = vpop.trf.xlu0
      %v413 = vpop.trf.xlu0
      %v414 = vpop.trf.xlu0
      %v415 = vld [vmem:[%s1] sm:$0xff]
      %vm416 = vcmask 64512
      %v418 = vsel %vm416, %v399, 0
      %v421 = vsel %vm416, %v400, 0
      %v424 = vsel %vm416, %v401, 0
      %v427 = vsel %vm416, %v402, 0
      %v430 = vsel %vm416, %v403, 0
      %v433 = vsel %vm416, %v404, 0
      %v436 = vsel %vm416, %v405, 0
      %v439 = vsel %vm416, %v406, 0
      %441 = vmatprep.subr.mxu0 0.0
      %442 = vmatpush1.msra.mxu0 %v415
      %443 = vmatprep.subr.mxu0 0.0
      %444 = vmatpush1.msra.mxu0 0.0
      %445 = vmatprep.subr.mxu0 0.0
      %446 = vmatpush1.msra.mxu0 0.0
      %447 = vmatprep.subr.mxu0 0.0
      %448 = vmatpush1.msra.mxu0 0.0
      %449 = vmatprep.subr.mxu0 0.0
      %450 = vmatpush1.msra.mxu0 0.0
      %451 = vmatprep.subr.mxu0 0.0
      %452 = vmatpush1.msra.mxu0 0.0
      %453 = vmatprep.subr.mxu0 0.0
      %454 = vmatpush1.msra.mxu0 0.0
      %455 = vmatprep.subr.mxu0 0.0
      %456 = vmatpush1.msra.mxu0 0.0
      %457 = vmatprep.subr.mxu0 0.0
      %458 = vmatpush1.msra.mxu0 0.0
      %459 = vmatprep.subr.mxu0 0.0
      %460 = vmatpush1.msra.mxu0 0.0
      %461 = vmatprep.subr.mxu0 0.0
      %462 = vmatpush1.msra.mxu0 0.0
      %463 = vmatprep.subr.mxu0 0.0
      %464 = vmatpush1.msra.mxu0 0.0
      %465 = vmatprep.subr.mxu0 0.0
      %466 = vmatpush1.msra.mxu0 0.0
      %467 = vmatprep.subr.mxu0 0.0
      %468 = vmatpush1.msra.mxu0 0.0
      %469 = vmatprep.subr.mxu0 0.0
      %470 = vmatpush1.msra.mxu0 0.0
      %471 = vmatprep.subr.mxu0 0.0
      %472 = vmatpush1.msra.mxu0 0.0
      %473 = vmatprep.subr.mxu0 0.0
      %474 = vmatpush1.msra.mxu0 0.0
      %475 = vmatprep.subr.mxu0 0.0
      %476 = vmatpush1.msra.mxu0 0.0
      %477 = vmatprep.subr.mxu0 0.0
      %478 = vmatpush1.msra.mxu0 0.0
      %479 = vmatprep.subr.mxu0 0.0
      %480 = vmatpush1.msra.mxu0 0.0
      %481 = vmatprep.subr.mxu0 0.0
      %482 = vmatpush1.msra.mxu0 0.0
      %483 = vmatprep.subr.mxu0 0.0
      %484 = vmatpush1.msra.mxu0 0.0
      %485 = vmatprep.subr.mxu0 0.0
      %486 = vmatpush1.msra.mxu0 0.0
      %487 = vmatprep.subr.mxu0 0.0
      %488 = vmatpush1.msra.mxu0 0.0
      %489 = vmatprep.subr.mxu0 0.0
      %490 = vmatpush1.msra.mxu0 0.0
      %491 = vmatprep.subr.mxu0 0.0
      %492 = vmatpush1.msra.mxu0 0.0
      %493 = vmatprep.subr.mxu0 0.0
      %494 = vmatpush1.msra.mxu0 0.0
      %495 = vmatprep.subr.mxu0 0.0
      %496 = vmatpush1.msra.mxu0 0.0
      %497 = vmatprep.subr.mxu0 0.0
      %498 = vmatpush1.msra.mxu0 0.0
      %499 = vmatprep.subr.mxu0 0.0
      %500 = vmatpush1.msra.mxu0 0.0
      %501 = vmatprep.subr.mxu0 0.0
      %502 = vmatpush1.msra.mxu0 0.0
      %503 = vmatprep.subr.mxu0 0.0
      %504 = vmatpush1.msra.mxu0 0.0
      %505 = vmatprep.mubr.f32.mxu0 0.0
      %506 = vmatmul.mubr.f32.gmra.mrb[0].mxu0 %v418
      %v507 = vpop.f32.mrb[0].mxu0
      %v508 = vadd.f32 0.0, %v507
      %v509 = vpop.f32.mrb[0].mxu0
      %510 = vmatprep.mubr.f32.mxu0 0.0
      %511 = vmatmul.mubr.f32.gmra.mrb[0].mxu0 %v421
      %v512 = vpop.f32.mrb[0].mxu0
      %v513 = vadd.f32 0.0, %v512
      %v514 = vpop.f32.mrb[0].mxu0
      %515 = vmatprep.mubr.f32.mxu0 0.0
      %516 = vmatmul.mubr.f32.gmra.mrb[0].mxu0 %v424
      %v517 = vpop.f32.mrb[0].mxu0
      %v518 = vadd.f32 0.0, %v517
      %v519 = vpop.f32.mrb[0].mxu0
      %520 = vmatprep.mubr.f32.mxu0 0.0
      %521 = vmatmul.mubr.f32.gmra.mrb[0].mxu0 %v427
      %v522 = vpop.f32.mrb[0].mxu0
      %v523 = vadd.f32 0.0, %v522
      %v524 = vpop.f32.mrb[0].mxu0
      %525 = vmatprep.mubr.f32.mxu0 0.0
      %526 = vmatmul.mubr.f32.gmra.mrb[0].mxu0 %v430
      %v527 = vpop.f32.mrb[0].mxu0
      %v528 = vadd.f32 0.0, %v527
      %v529 = vpop.f32.mrb[0].mxu0
      %530 = vmatprep.mubr.f32.mxu0 0.0
      %531 = vmatmul.mubr.f32.gmra.mrb[0].mxu0 %v433
      %v532 = vpop.f32.mrb[0].mxu0
      %v533 = vadd.f32 0.0, %v532
      %v534 = vpop.f32.mrb[0].mxu0
      %535 = vmatprep.mubr.f32.mxu0 0.0
      %536 = vmatmul.mubr.f32.gmra.mrb[0].mxu0 %v436
      %v537 = vpop.f32.mrb[0].mxu0
      %v538 = vadd.f32 0.0, %v537
      %v539 = vpop.f32.mrb[0].mxu0
      %540 = vmatprep.mubr.f32.mxu0 0.0
      %541 = vmatmul.mubr.f32.gmra.mrb[0].mxu0 %v439
      %v542 = vpop.f32.mrb[0].mxu0
      %v543 = vadd.f32 0.0, %v542
      %v544 = vpop.f32.mrb[0].mxu0
      %545 = vdwg.mxu0
      %v546 = vlaneseq
      %v547 = vand.u32 %v546, 127
      %v548 = vsel %vm416, %v508, -inf
      %549 = vmax.xlane.f32.xlu0 %v548
      %v550 = vpop.xlane.xlu0 %549
      %v551 = vsel %vm416, %v513, -inf
      %552 = vmax.xlane.f32.xlu0 %v551
      %v553 = vpop.xlane.xlu0 %552
      %v554 = vsel %vm416, %v518, -inf
      %555 = vmax.xlane.f32.xlu0 %v554
      %v556 = vpop.xlane.xlu0 %555
      %v557 = vsel %vm416, %v523, -inf
      %558 = vmax.xlane.f32.xlu0 %v557
      %v559 = vpop.xlane.xlu0 %558
      %v560 = vsel %vm416, %v528, -inf
      %561 = vmax.xlane.f32.xlu0 %v560
      %v562 = vpop.xlane.xlu0 %561
      %v563 = vsel %vm416, %v533, -inf
      %564 = vmax.xlane.f32.xlu0 %v563
      %v565 = vpop.xlane.xlu0 %564
      %v566 = vsel %vm416, %v538, -inf
      %567 = vmax.xlane.f32.xlu0 %v566
      %v568 = vpop.xlane.xlu0 %567
      %v569 = vsel %vm416, %v543, -inf
      %570 = vmax.xlane.f32.xlu0 %v569
      %v571 = vpop.xlane.xlu0 %570
      %vm572 = vcmp.ge.f32.partialorder %v508, %v550
      %vm573 = vcmp.ge.f32.partialorder %v513, %v553
      %vm574 = vcmp.ge.f32.partialorder %v518, %v556
      %vm575 = vcmp.ge.f32.partialorder %v523, %v559
      %vm576 = vcmp.ge.f32.partialorder %v528, %v562
      %vm577 = vcmp.ge.f32.partialorder %v533, %v565
      %vm578 = vcmp.ge.f32.partialorder %v538, %v568
      %vm579 = vcmp.ge.f32.partialorder %v543, %v571
      %v580 = vsel %vm572, %v547, 8
      %v581 = vsel %vm573, %v547, 8
      %v582 = vsel %vm574, %v547, 8
      %v583 = vsel %vm575, %v547, 8
      %v584 = vsel %vm576, %v547, 8
      %v585 = vsel %vm577, %v547, 8
      %v586 = vsel %vm578, %v547, 8
      %v587 = vsel %vm579, %v547, 8
      %v588 = vsel %vm416, %v580, 2147483647
      %v589 = vand.u32 %v588, 65535
      %v590 = vshra.s32 %v588, 16
      %v591 = vcvt.s32.f32 %v589
      %v592 = vcvt.s32.f32 %v590
      %593 = vmin.xlane.f32.xlu0 %v592
      %v594 = vpop.xlane.xlu0 %593
      %vm595 = vcmp.eq.f32.partialorder %v592, %v594
      %v596 = vsel %vm595, %v591, inf
      %597 = vmin.xlane.f32.xlu0 %v596
      %v598 = vpop.xlane.xlu0 %597
      %v599 = vcvt.f32.s32 %v598
      %v600 = vcvt.f32.s32 %v594
      %v601 = vshll.u32 %v600, 16
      %v602 = vadd.s32 %v601, %v599
      %v603 = vsel %vm416, %v581, 2147483647
      %v604 = vand.u32 %v603, 65535
      %v605 = vshra.s32 %v603, 16
      %v606 = vcvt.s32.f32 %v604
      %v607 = vcvt.s32.f32 %v605
      %608 = vmin.xlane.f32.xlu0 %v607
      %v609 = vpop.xlane.xlu0 %608
      %vm610 = vcmp.eq.f32.partialorder %v607, %v609
      %v611 = vsel %vm610, %v606, inf
      %612 = vmin.xlane.f32.xlu0 %v611
      %v613 = vpop.xlane.xlu0 %612
      %v614 = vcvt.f32.s32 %v613
      %v615 = vcvt.f32.s32 %v609
      %v616 = vshll.u32 %v615, 16
      %v617 = vadd.s32 %v616, %v614
      %v618 = vsel %vm416, %v582, 2147483647
      %v619 = vand.u32 %v618, 65535
      %v620 = vshra.s32 %v618, 16
      %v621 = vcvt.s32.f32 %v619
      %v622 = vcvt.s32.f32 %v620
      %623 = vmin.xlane.f32.xlu0 %v622
      %v624 = vpop.xlane.xlu0 %623
      %vm625 = vcmp.eq.f32.partialorder %v622, %v624
      %v626 = vsel %vm625, %v621, inf
      %627 = vmin.xlane.f32.xlu0 %v626
      %v628 = vpop.xlane.xlu0 %627
      %v629 = vcvt.f32.s32 %v628
      %v630 = vcvt.f32.s32 %v624
      %v631 = vshll.u32 %v630, 16
      %v632 = vadd.s32 %v631, %v629
      %v633 = vsel %vm416, %v583, 2147483647
      %v634 = vand.u32 %v633, 65535
      %v635 = vshra.s32 %v633, 16
      %v636 = vcvt.s32.f32 %v634
      %v637 = vcvt.s32.f32 %v635
      %638 = vmin.xlane.f32.xlu0 %v637
      %v639 = vpop.xlane.xlu0 %638
      %vm640 = vcmp.eq.f32.partialorder %v637, %v639
      %v641 = vsel %vm640, %v636, inf
      %642 = vmin.xlane.f32.xlu0 %v641
      %v643 = vpop.xlane.xlu0 %642
      %v644 = vcvt.f32.s32 %v643
      %v645 = vcvt.f32.s32 %v639
      %v646 = vshll.u32 %v645, 16
      %v647 = vadd.s32 %v646, %v644
      %v648 = vsel %vm416, %v584, 2147483647
      %v649 = vand.u32 %v648, 65535
      %v650 = vshra.s32 %v648, 16
      %v651 = vcvt.s32.f32 %v649
      %v652 = vcvt.s32.f32 %v650
      %653 = vmin.xlane.f32.xlu0 %v652
      %v654 = vpop.xlane.xlu0 %653
      %vm655 = vcmp.eq.f32.partialorder %v652, %v654
      %v656 = vsel %vm655, %v651, inf
      %657 = vmin.xlane.f32.xlu0 %v656
      %v658 = vpop.xlane.xlu0 %657
      %v659 = vcvt.f32.s32 %v658
      %v660 = vcvt.f32.s32 %v654
      %v661 = vshll.u32 %v660, 16
      %v662 = vadd.s32 %v661, %v659
      %v663 = vsel %vm416, %v585, 2147483647
      %v664 = vand.u32 %v663, 65535
      %v665 = vshra.s32 %v663, 16
      %v666 = vcvt.s32.f32 %v664
      %v667 = vcvt.s32.f32 %v665
      %668 = vmin.xlane.f32.xlu0 %v667
      %v669 = vpop.xlane.xlu0 %668
      %vm670 = vcmp.eq.f32.partialorder %v667, %v669
      %v671 = vsel %vm670, %v666, inf
      %672 = vmin.xlane.f32.xlu0 %v671
      %v673 = vpop.xlane.xlu0 %672
      %v674 = vcvt.f32.s32 %v673
      %v675 = vcvt.f32.s32 %v669
      %v676 = vshll.u32 %v675, 16
      %v677 = vadd.s32 %v676, %v674
      %v678 = vsel %vm416, %v586, 2147483647
      %v679 = vand.u32 %v678, 65535
      %v680 = vshra.s32 %v678, 16
      %v681 = vcvt.s32.f32 %v679
      %v682 = vcvt.s32.f32 %v680
      %683 = vmin.xlane.f32.xlu0 %v682
      %v684 = vpop.xlane.xlu0 %683
      %vm685 = vcmp.eq.f32.partialorder %v682, %v684
      %v686 = vsel %vm685, %v681, inf
      %687 = vmin.xlane.f32.xlu0 %v686
      %v688 = vpop.xlane.xlu0 %687
      %v689 = vcvt.f32.s32 %v688
      %v690 = vcvt.f32.s32 %v684
      %v691 = vshll.u32 %v690, 16
      %v692 = vadd.s32 %v691, %v689
      %v693 = vsel %vm416, %v587, 2147483647
      %v694 = vand.u32 %v693, 65535
      %v695 = vshra.s32 %v693, 16
      %v696 = vcvt.s32.f32 %v694
      %v697 = vcvt.s32.f32 %v695
      %698 = vmin.xlane.f32.xlu0 %v697
      %v699 = vpop.xlane.xlu0 %698
      %vm700 = vcmp.eq.f32.partialorder %v697, %v699
      %v701 = vsel %vm700, %v696, inf
      %702 = vmin.xlane.f32.xlu0 %v701
      %v703 = vpop.xlane.xlu0 %702
      %v704 = vcvt.f32.s32 %v703
      %v705 = vcvt.f32.s32 %v699
      %v706 = vshll.u32 %v705, 16
      %v707 = vadd.s32 %v706, %v704
      %v708 = vlaneseq
      %v709 = vshrl.u32 %v708, 7
      %vm710 = vcmp.lt.s32.totalorder %v547, 0
      %v711 = vsub.s32 0, %v547
      %v712 = vsel %vm710, %v711, %v547
      %v713 = vshrl.u32 %v712, 3
      %v714 = vand.u32 %v712, 7
      %v715 = vsub.s32 0, %v714
      %v716 = vsel %vm710, %v715, %v714
      %vm717 = vcmp.ne.s32.totalorder %v716, 0
      %vm718 = vcmp.lt.s32.totalorder %v716, 0
      %vm719 = vmand %vm718, %vm717
      %v720 = vadd.s32 %v716, 8
      %v721 = vsel %vm719, %v720, %v716
      %vm722 = vcmp.eq.s32.totalorder %v721, %v709
      %v723 = vsel %vm722, 1, 0
      %v724 = vcvt.s32.f32 %v723
      %725 = vmatprep.subr.mxu0 0.0
      %726 = vmatpush1.msra.mxu0 %v724
      %727 = vmatprep.subr.mxu0 0.0
      %728 = vmatpush1.msra.mxu0 0.0
      %729 = vmatprep.subr.mxu0 0.0
      %730 = vmatpush1.msra.mxu0 0.0
      %731 = vmatprep.subr.mxu0 0.0
      %732 = vmatpush1.msra.mxu0 0.0
      %733 = vmatprep.subr.mxu0 0.0
      %734 = vmatpush1.msra.mxu0 0.0
      %735 = vmatprep.subr.mxu0 0.0
      %736 = vmatpush1.msra.mxu0 0.0
      %737 = vmatprep.subr.mxu0 0.0
      %738 = vmatpush1.msra.mxu0 0.0
      %739 = vmatprep.subr.mxu0 0.0
      %740 = vmatpush1.msra.mxu0 0.0
      %741 = vmatprep.subr.mxu0 0.0
      %742 = vmatpush1.msra.mxu0 0.0
      %743 = vmatprep.subr.mxu0 0.0
      %744 = vmatpush1.msra.mxu0 0.0
      %745 = vmatprep.subr.mxu0 0.0
      %746 = vmatpush1.msra.mxu0 0.0
      %747 = vmatprep.subr.mxu0 0.0
      %748 = vmatpush1.msra.mxu0 0.0
      %749 = vmatprep.subr.mxu0 0.0
      %750 = vmatpush1.msra.mxu0 0.0
      %751 = vmatprep.subr.mxu0 0.0
      %752 = vmatpush1.msra.mxu0 0.0
      %753 = vmatprep.subr.mxu0 0.0
      %754 = vmatpush1.msra.mxu0 0.0
      %755 = vmatprep.subr.mxu0 0.0
      %756 = vmatpush1.msra.mxu0 0.0
      %757 = vmatprep.subr.mxu0 0.0
      %758 = vmatpush1.msra.mxu0 0.0
      %759 = vmatprep.subr.mxu0 0.0
      %760 = vmatpush1.msra.mxu0 0.0
      %761 = vmatprep.subr.mxu0 0.0
      %762 = vmatpush1.msra.mxu0 0.0
      %763 = vmatprep.subr.mxu0 0.0
      %764 = vmatpush1.msra.mxu0 0.0
      %765 = vmatprep.subr.mxu0 0.0
      %766 = vmatpush1.msra.mxu0 0.0
      %767 = vmatprep.subr.mxu0 0.0
      %768 = vmatpush1.msra.mxu0 0.0
      %769 = vmatprep.subr.mxu0 0.0
      %770 = vmatpush1.msra.mxu0 0.0
      %771 = vmatprep.subr.mxu0 0.0
      %772 = vmatpush1.msra.mxu0 0.0
      %773 = vmatprep.subr.mxu0 0.0
      %774 = vmatpush1.msra.mxu0 0.0
      %775 = vmatprep.subr.mxu0 0.0
      %776 = vmatpush1.msra.mxu0 0.0
      %777 = vmatprep.subr.mxu0 0.0
      %778 = vmatpush1.msra.mxu0 0.0
      %779 = vmatprep.subr.mxu0 0.0
      %780 = vmatpush1.msra.mxu0 0.0
      %781 = vmatprep.subr.mxu0 0.0
      %782 = vmatpush1.msra.mxu0 0.0
      %783 = vmatprep.subr.mxu0 0.0
      %784 = vmatpush1.msra.mxu0 0.0
      %785 = vmatprep.subr.mxu0 0.0
      %786 = vmatpush1.msra.mxu0 0.0
      %787 = vmatprep.subr.mxu0 0.0
      %788 = vmatpush1.msra.mxu0 0.0
      %789 = vmatprep.mubr.f32.mxu0 0.0
      %790 = vmatmul.mubr.f32.gmra.mrb[0].mxu0 %v418
      %v791 = vpop.f32.mrb[0].mxu0
      %v792 = vadd.f32 0.0, %v791
      %v793 = vpop.f32.mrb[0].mxu0
      %794 = vmatprep.mubr.f32.mxu0 0.0
      %795 = vmatmul.mubr.f32.gmra.mrb[0].mxu0 %v421
      %v796 = vpop.f32.mrb[0].mxu0
      %v797 = vadd.f32 0.0, %v796
      %v798 = vpop.f32.mrb[0].mxu0
      %799 = vmatprep.mubr.f32.mxu0 0.0
      %800 = vmatmul.mubr.f32.gmra.mrb[0].mxu0 %v424
      %v801 = vpop.f32.mrb[0].mxu0
      %v802 = vadd.f32 0.0, %v801
      %v803 = vpop.f32.mrb[0].mxu0
      %804 = vmatprep.mubr.f32.mxu0 0.0
      %805 = vmatmul.mubr.f32.gmra.mrb[0].mxu0 %v427
      %v806 = vpop.f32.mrb[0].mxu0
      %v807 = vadd.f32 0.0, %v806
      %v808 = vpop.f32.mrb[0].mxu0
      %809 = vmatprep.mubr.f32.mxu0 0.0
      %810 = vmatmul.mubr.f32.gmra.mrb[0].mxu0 %v430
      %v811 = vpop.f32.mrb[0].mxu0
      %v812 = vadd.f32 0.0, %v811
      %v813 = vpop.f32.mrb[0].mxu0
      %814 = vmatprep.mubr.f32.mxu0 0.0
      %815 = vmatmul.mubr.f32.gmra.mrb[0].mxu0 %v433
      %v816 = vpop.f32.mrb[0].mxu0
      %v817 = vadd.f32 0.0, %v816
      %v818 = vpop.f32.mrb[0].mxu0
      %819 = vmatprep.mubr.f32.mxu0 0.0
      %820 = vmatmul.mubr.f32.gmra.mrb[0].mxu0 %v436
      %v821 = vpop.f32.mrb[0].mxu0
      %v822 = vadd.f32 0.0, %v821
      %v823 = vpop.f32.mrb[0].mxu0
      %824 = vmatprep.mubr.f32.mxu0 0.0
      %825 = vmatmul.mubr.f32.gmra.mrb[0].mxu0 %v439
      %v826 = vpop.f32.mrb[0].mxu0
      %v827 = vadd.f32 0.0, %v826
      %v828 = vpop.f32.mrb[0].mxu0
      %829 = vdwg.mxu0
      %v830 = vmul.u32 %v602, 8
      %v831 = vmul.u32 %v617, 8
      %v832 = vmul.u32 %v632, 8
      %v833 = vmul.u32 %v647, 8
      %v834 = vmul.u32 %v662, 8
      %v835 = vmul.u32 %v677, 8
      %v836 = vmul.u32 %v692, 8
      %v837 = vmul.u32 %v707, 8
      %vm838 = vcmp.ge.s32.totalorder %v547, %v830
      %vm839 = vcmp.ge.s32.totalorder %v547, %v831
      %vm840 = vcmp.ge.s32.totalorder %v547, %v832
      %vm841 = vcmp.ge.s32.totalorder %v547, %v833
      %vm842 = vcmp.ge.s32.totalorder %v547, %v834
      %vm843 = vcmp.ge.s32.totalorder %v547, %v835
      %vm844 = vcmp.ge.s32.totalorder %v547, %v836
      %vm845 = vcmp.ge.s32.totalorder %v547, %v837
      %v846 = vadd.s32 %v602, 1
      %v847 = vadd.s32 %v617, 1
      %v848 = vadd.s32 %v632, 1
      %v849 = vadd.s32 %v647, 1
      %v850 = vadd.s32 %v662, 1
      %v851 = vadd.s32 %v677, 1
      %v852 = vadd.s32 %v692, 1
      %v853 = vadd.s32 %v707, 1
      %v854 = vmul.u32 %v846, 8
      %v855 = vmul.u32 %v847, 8
      %v856 = vmul.u32 %v848, 8
      %v857 = vmul.u32 %v849, 8
      %v858 = vmul.u32 %v850, 8
      %v859 = vmul.u32 %v851, 8
      %v860 = vmul.u32 %v852, 8
      %v861 = vmul.u32 %v853, 8
      %vm862 = vcmp.lt.s32.totalorder %v547, %v854
      %vm863 = vcmp.lt.s32.totalorder %v547, %v855
      %vm864 = vcmp.lt.s32.totalorder %v547, %v856
      %vm865 = vcmp.lt.s32.totalorder %v547, %v857
      %vm866 = vcmp.lt.s32.totalorder %v547, %v858
      %vm867 = vcmp.lt.s32.totalorder %v547, %v859
      %vm868 = vcmp.lt.s32.totalorder %v547, %v860
      %vm869 = vcmp.lt.s32.totalorder %v547, %v861
      %vm870 = vmand %vm838, %vm862
      %vm871 = vmand %vm839, %vm863
      %vm872 = vmand %vm840, %vm864
      %vm873 = vmand %vm841, %vm865
      %vm874 = vmand %vm842, %vm866
      %vm875 = vmand %vm843, %vm867
      %vm876 = vmand %vm844, %vm868
      %vm877 = vmand %vm845, %vm869
      %v878 = vsel %vm870, %v792, 0.0
      %v879 = vsel %vm871, %v797, 0.0
      %v880 = vsel %vm872, %v802, 0.0
      %v881 = vsel %vm873, %v807, 0.0
      %v882 = vsel %vm874, %v812, 0.0
      %v883 = vsel %vm875, %v817, 0.0
      %v884 = vsel %vm876, %v822, 0.0
      %v885 = vsel %vm877, %v827, 0.0
      %v886 = vld [vmem:[%s2] sm:$0xff]
      %v887 = vld [vmem:[%s2 + $0x8] sm:$0xff]
      %v888 = vld [vmem:[%s2 + $0x10] sm:$0xff]
      %v889 = vld [vmem:[%s2 + $0x18] sm:$0xff]
      %v890 = vld [vmem:[%s2 + $0x20] sm:$0xff]
      %v891 = vld [vmem:[%s2 + $0x28] sm:$0xff]
      %v892 = vld [vmem:[%s2 + $0x30] sm:$0xff]
      %v893 = vld [vmem:[%s2 + $0x38] sm:$0xff]
      %vm894 = vcmask 523264
      %v896 = vsel %vm894, %v878, 0
      %v899 = vsel %vm894, %v879, 0
      %v902 = vsel %vm894, %v880, 0
      %v905 = vsel %vm894, %v881, 0
      %v908 = vsel %vm894, %v882, 0
      %v911 = vsel %vm894, %v883, 0
      %v914 = vsel %vm894, %v884, 0
      %v917 = vsel %vm894, %v885, 0
      %919 = vmatprep.subr.mxu0 0.0
      %920 = vmatpush1.msra.mxu0 %v886
      %921 = vmatprep.subr.mxu0 0.0
      %922 = vmatpush1.msra.mxu0 %v887
      %923 = vmatprep.subr.mxu0 0.0
      %924 = vmatpush1.msra.mxu0 %v888
      %925 = vmatprep.subr.mxu0 0.0
      %926 = vmatpush1.msra.mxu0 %v889
      %927 = vmatprep.subr.mxu0 0.0
      %928 = vmatpush1.msra.mxu0 %v890
      %929 = vmatprep.subr.mxu0 0.0
      %930 = vmatpush1.msra.mxu0 %v891
      %931 = vmatprep.subr.mxu0 0.0
      %932 = vmatpush1.msra.mxu0 %v892
      %933 = vmatprep.subr.mxu0 0.0
      %934 = vmatpush1.msra.mxu0 %v893
      %935 = vmatprep.subr.mxu0 0.0
      %936 = vmatpush1.msra.mxu0 0.0
      %937 = vmatprep.subr.mxu0 0.0
      %938 = vmatpush1.msra.mxu0 0.0
      %939 = vmatprep.subr.mxu0 0.0
      %940 = vmatpush1.msra.mxu0 0.0
      %941 = vmatprep.subr.mxu0 0.0
      %942 = vmatpush1.msra.mxu0 0.0
      %943 = vmatprep.subr.mxu0 0.0
      %944 = vmatpush1.msra.mxu0 0.0
      %945 = vmatprep.subr.mxu0 0.0
      %946 = vmatpush1.msra.mxu0 0.0
      %947 = vmatprep.subr.mxu0 0.0
      %948 = vmatpush1.msra.mxu0 0.0
      %949 = vmatprep.subr.mxu0 0.0
      %950 = vmatpush1.msra.mxu0 0.0
      %951 = vmatprep.subr.mxu0 0.0
      %952 = vmatpush1.msra.mxu0 0.0
      %953 = vmatprep.subr.mxu0 0.0
      %954 = vmatpush1.msra.mxu0 0.0
      %955 = vmatprep.subr.mxu0 0.0
      %956 = vmatpush1.msra.mxu0 0.0
      %957 = vmatprep.subr.mxu0 0.0
      %958 = vmatpush1.msra.mxu0 0.0
      %959 = vmatprep.subr.mxu0 0.0
      %960 = vmatpush1.msra.mxu0 0.0
      %961 = vmatprep.subr.mxu0 0.0
      %962 = vmatpush1.msra.mxu0 0.0
      %963 = vmatprep.subr.mxu0 0.0
      %964 = vmatpush1.msra.mxu0 0.0
      %965 = vmatprep.subr.mxu0 0.0
      %966 = vmatpush1.msra.mxu0 0.0
      %967 = vmatprep.subr.mxu0 0.0
      %968 = vmatpush1.msra.mxu0 0.0
      %969 = vmatprep.subr.mxu0 0.0
      %970 = vmatpush1.msra.mxu0 0.0
      %971 = vmatprep.subr.mxu0 0.0
      %972 = vmatpush1.msra.mxu0 0.0
      %973 = vmatprep.subr.mxu0 0.0
      %974 = vmatpush1.msra.mxu0 0.0
      %975 = vmatprep.subr.mxu0 0.0
      %976 = vmatpush1.msra.mxu0 0.0
      %977 = vmatprep.subr.mxu0 0.0
      %978 = vmatpush1.msra.mxu0 0.0
      %979 = vmatprep.subr.mxu0 0.0
      %980 = vmatpush1.msra.mxu0 0.0
      %981 = vmatprep.subr.mxu0 0.0
      %982 = vmatpush1.msra.mxu0 0.0
      %983 = vmatprep.mubr.f32.mxu0 0.0
      %984 = vmatmul.mubr.f32.gmra.mrb[0].mxu0 %v896
      %v985 = vpop.f32.mrb[0].mxu0
      %v986 = vadd.f32 0.0, %v985
      %v987 = vpop.f32.mrb[0].mxu0
      %988 = vmatprep.mubr.f32.mxu0 0.0
      %989 = vmatmul.mubr.f32.gmra.mrb[0].mxu0 %v899
      %v990 = vpop.f32.mrb[0].mxu0
      %v991 = vadd.f32 0.0, %v990
      %v992 = vpop.f32.mrb[0].mxu0
      %993 = vmatprep.mubr.f32.mxu0 0.0
      %994 = vmatmul.mubr.f32.gmra.mrb[0].mxu0 %v902
      %v995 = vpop.f32.mrb[0].mxu0
      %v996 = vadd.f32 0.0, %v995
      %v997 = vpop.f32.mrb[0].mxu0
      %998 = vmatprep.mubr.f32.mxu0 0.0
      %999 = vmatmul.mubr.f32.gmra.mrb[0].mxu0 %v905
      %v1000 = vpop.f32.mrb[0].mxu0
      %v1001 = vadd.f32 0.0, %v1000
      %v1002 = vpop.f32.mrb[0].mxu0
      %1003 = vmatprep.mubr.f32.mxu0 0.0
      %1004 = vmatmul.mubr.f32.gmra.mrb[0].mxu0 %v908
      %v1005 = vpop.f32.mrb[0].mxu0
      %v1006 = vadd.f32 0.0, %v1005
      %v1007 = vpop.f32.mrb[0].mxu0
      %1008 = vmatprep.mubr.f32.mxu0 0.0
      %1009 = vmatmul.mubr.f32.gmra.mrb[0].mxu0 %v911
      %v1010 = vpop.f32.mrb[0].mxu0
      %v1011 = vadd.f32 0.0, %v1010
      %v1012 = vpop.f32.mrb[0].mxu0
      %1013 = vmatprep.mubr.f32.mxu0 0.0
      %1014 = vmatmul.mubr.f32.gmra.mrb[0].mxu0 %v914
      %v1015 = vpop.f32.mrb[0].mxu0
      %v1016 = vadd.f32 0.0, %v1015
      %v1017 = vpop.f32.mrb[0].mxu0
      %1018 = vmatprep.mubr.f32.mxu0 0.0
      %1019 = vmatmul.mubr.f32.gmra.mrb[0].mxu0 %v917
      %v1020 = vpop.f32.mrb[0].mxu0
      %v1021 = vadd.f32 0.0, %v1020
      %v1022 = vpop.f32.mrb[0].mxu0
      %1023 = vdwg.mxu0
      %v1024 = vld [vmem:[%s3] sm:$0x1]
      %v1026 = vlaneseq
      %v1027 = vshrl.u32 %v1026, 7
      %v1028 = vsub.s32 0, %v1027
      %v1029 = vrot.slane %v1024, %v1028
      %v1031 = vmul.f32 %v986, %v1029
      %v1032 = vmul.f32 %v991, %v1029
      %v1033 = vmul.f32 %v996, %v1029
      %v1034 = vmul.f32 %v1001, %v1029
      %v1035 = vmul.f32 %v1006, %v1029
      %v1036 = vmul.f32 %v1011, %v1029
      %v1037 = vmul.f32 %v1016, %v1029
      %v1038 = vmul.f32 %v1021, %v1029
      %v1039 = vld [vmem:[%s4] sm:$0x1]
      %v1041 = vlaneseq
      %v1042 = vshrl.u32 %v1041, 7
      %v1043 = vsub.s32 0, %v1042
      %v1044 = vrot.slane %v1039, %v1043
      %v1046 = vadd.f32 %v1031, %v1044
      %v1047 = vadd.f32 %v1032, %v1044
      %v1048 = vadd.f32 %v1033, %v1044
      %v1049 = vadd.f32 %v1034, %v1044
      %v1050 = vadd.f32 %v1035, %v1044
      %v1051 = vadd.f32 %v1036, %v1044
      %v1052 = vadd.f32 %v1037, %v1044
      %v1053 = vadd.f32 %v1038, %v1044
      %v1054 = vmax.f32 %v1046, 0.0
      %v1055 = vmax.f32 %v1047, 0.0
      %v1056 = vmax.f32 %v1048, 0.0
      %v1057 = vmax.f32 %v1049, 0.0
      %v1058 = vmax.f32 %v1050, 0.0
      %v1059 = vmax.f32 %v1051, 0.0
      %v1060 = vmax.f32 %v1052, 0.0
      %v1061 = vmax.f32 %v1053, 0.0
      %1062 = vst.msk [vmem:[#allocation2] sm:$0xff] %vm416, 0.0
      %vm1063 = vcmask 58368
      %1064 = vst.msk [vmem:[#allocation2 + $0x8] sm:$0x3] %vm1063, 0.0
      %1065 = vst.msk [vmem:[#allocation2 + $0x10] sm:$0xff] %vm416, 0.0
      %1066 = vst.msk [vmem:[#allocation2 + $0x18] sm:$0x3] %vm1063, 0.0
      %1067 = vst.msk [vmem:[#allocation2 + $0x20] sm:$0xff] %vm416, 0.0
      %1068 = vst.msk [vmem:[#allocation2 + $0x28] sm:$0x3] %vm1063, 0.0
      %1069 = vst.msk [vmem:[#allocation2 + $0x30] sm:$0xff] %vm416, 0.0
      %1070 = vst.msk [vmem:[#allocation2 + $0x38] sm:$0x3] %vm1063, 0.0
      %1071 = vst.msk [vmem:[#allocation2 + $0x40] sm:$0xff] %vm416, 0.0
      %1072 = vst.msk [vmem:[#allocation2 + $0x48] sm:$0x3] %vm1063, 0.0
      %1073 = vst.msk [vmem:[#allocation2 + $0x50] sm:$0xff] %vm416, 0.0
      %1074 = vst.msk [vmem:[#allocation2 + $0x58] sm:$0x3] %vm1063, 0.0
      %1075 = vst.msk [vmem:[#allocation2 + $0x60] sm:$0xff] %vm416, 0.0
      %1076 = vst.msk [vmem:[#allocation2 + $0x68] sm:$0x3] %vm1063, 0.0
      %1077 = vst.msk [vmem:[#allocation2 + $0x70] sm:$0xff] %vm416, 0.0
      %1078 = vst.msk [vmem:[#allocation2 + $0x78] sm:$0x3] %vm1063, 0.0
      %1079 = vst.msk [vmem:[#allocation2 + $0x80] sm:$0xff] %vm416, 0.0
      %1080 = vst.msk [vmem:[#allocation2 + $0x88] sm:$0x3] %vm1063, 0.0
      %1081 = vst.msk [vmem:[#allocation2 + $0x90] sm:$0xff] %vm416, 0.0
      %1082 = vst.msk [vmem:[#allocation2 + $0x98] sm:$0x3] %vm1063, 0.0
      %s1083 = scalar_lea.vmem [#allocation2], 16
      %1084 = vst.msk [vmem:[%s1083 + $0x1] sm:$0xff] %vm416, %v1054
      %s1085 = scalar_lea.vmem [#allocation2], 32
      %1086 = vst.msk [vmem:[%s1085 + $0x1] sm:$0xff] %vm416, %v1055
      %s1087 = scalar_lea.vmem [#allocation2], 48
      %1088 = vst.msk [vmem:[%s1087 + $0x1] sm:$0xff] %vm416, %v1056
      %s1089 = scalar_lea.vmem [#allocation2], 64
      %1090 = vst.msk [vmem:[%s1089 + $0x1] sm:$0xff] %vm416, %v1057
      %s1091 = scalar_lea.vmem [#allocation2], 80
      %1092 = vst.msk [vmem:[%s1091 + $0x1] sm:$0xff] %vm416, %v1058
      %s1093 = scalar_lea.vmem [#allocation2], 96
      %1094 = vst.msk [vmem:[%s1093 + $0x1] sm:$0xff] %vm416, %v1059
      %s1095 = scalar_lea.vmem [#allocation2], 112
      %1096 = vst.msk [vmem:[%s1095 + $0x1] sm:$0xff] %vm416, %v1060
      %s1097 = scalar_lea.vmem [#allocation2], 128
      %1098 = vst.msk [vmem:[%s1097 + $0x1] sm:$0xff] %vm416, %v1061
      %v1099 = vld [vmem:[#allocation2] sm:$0xff]
      %v1100 = vld [vmem:[#allocation2 + $0x10] sm:$0xff]
      %v1101 = vld [vmem:[#allocation2 + $0x20] sm:$0xff]
      %v1102 = vld [vmem:[#allocation2 + $0x30] sm:$0xff]
      %v1103 = vld [vmem:[#allocation2 + $0x40] sm:$0xff]
      %v1104 = vld [vmem:[#allocation2 + $0x50] sm:$0xff]
      %v1105 = vld [vmem:[#allocation2 + $0x60] sm:$0xff]
      %v1106 = vld [vmem:[#allocation2 + $0x70] sm:$0xff]
      %v1107 = vld [vmem:[%s5] sm:$0x1]
      %v1108 = vlaneseq
      %v1109 = vshrl.u32 %v1108, 7
      %v1110 = vsub.s32 0, %v1109
      %v1111 = vrot.slane %v1107, %v1110
      %v1112 = vmul.f32 %v1099, %v1111
      %v1113 = vmul.f32 %v1100, %v1111
      %v1114 = vmul.f32 %v1101, %v1111
      %v1115 = vmul.f32 %v1102, %v1111
      %v1116 = vmul.f32 %v1103, %v1111
      %v1117 = vmul.f32 %v1104, %v1111
      %v1118 = vmul.f32 %v1105, %v1111
      %v1119 = vmul.f32 %v1106, %v1111
      %v1120 = vadd.f32 %v1112, 0.0
      %v1121 = vadd.f32 %v1113, 0.0
      %v1122 = vadd.f32 %v1114, 0.0
      %v1123 = vadd.f32 %v1115, 0.0
      %v1124 = vadd.f32 %v1116, 0.0
      %v1125 = vadd.f32 %v1117, 0.0
      %v1126 = vadd.f32 %v1118, 0.0
      %v1127 = vadd.f32 %v1119, 0.0
      %v1128 = vld [vmem:[#allocation2 + $0x1] sm:$0xff]
      %v1129 = vld [vmem:[#allocation2 + $0x11] sm:$0xff]
      %v1130 = vld [vmem:[#allocation2 + $0x21] sm:$0xff]
      %v1131 = vld [vmem:[#allocation2 + $0x31] sm:$0xff]
      %v1132 = vld [vmem:[#allocation2 + $0x41] sm:$0xff]
      %v1133 = vld [vmem:[#allocation2 + $0x51] sm:$0xff]
      %v1134 = vld [vmem:[#allocation2 + $0x61] sm:$0xff]
      %v1135 = vld [vmem:[#allocation2 + $0x71] sm:$0xff]
      %v1136 = vld [vmem:[%s5 + $0x1] sm:$0x1]
      %v1137 = vlaneseq
      %v1138 = vshrl.u32 %v1137, 7
      %v1139 = vsub.s32 0, %v1138
      %v1140 = vrot.slane %v1136, %v1139
      %v1141 = vmul.f32 %v1128, %v1140
      %v1142 = vmul.f32 %v1129, %v1140
      %v1143 = vmul.f32 %v1130, %v1140
      %v1144 = vmul.f32 %v1131, %v1140
      %v1145 = vmul.f32 %v1132, %v1140
      %v1146 = vmul.f32 %v1133, %v1140
      %v1147 = vmul.f32 %v1134, %v1140
      %v1148 = vmul.f32 %v1135, %v1140
      %v1149 = vadd.f32 %v1120, %v1141
      %v1150 = vadd.f32 %v1121, %v1142
      %v1151 = vadd.f32 %v1122, %v1143
      %v1152 = vadd.f32 %v1123, %v1144
      %v1153 = vadd.f32 %v1124, %v1145
      %v1154 = vadd.f32 %v1125, %v1146
      %v1155 = vadd.f32 %v1126, %v1147
      %v1156 = vadd.f32 %v1127, %v1148
      %v1157 = vld [vmem:[#allocation2 + $0x2] sm:$0xff]
      %v1158 = vld [vmem:[#allocation2 + $0x12] sm:$0xff]
      %v1159 = vld [vmem:[#allocation2 + $0x22] sm:$0xff]
      %v1160 = vld [vmem:[#allocation2 + $0x32] sm:$0xff]
      %v1161 = vld [vmem:[#allocation2 + $0x42] sm:$0xff]
      %v1162 = vld [vmem:[#allocation2 + $0x52] sm:$0xff]
      %v1163 = vld [vmem:[#allocation2 + $0x62] sm:$0xff]
      %v1164 = vld [vmem:[#allocation2 + $0x72] sm:$0xff]
      %v1165 = vld [vmem:[%s5 + $0x2] sm:$0x1]
      %v1166 = vlaneseq
      %v1167 = vshrl.u32 %v1166, 7
      %v1168 = vsub.s32 0, %v1167
      %v1169 = vrot.slane %v1165, %v1168
      %v1170 = vmul.f32 %v1157, %v1169
      %v1171 = vmul.f32 %v1158, %v1169
      %v1172 = vmul.f32 %v1159, %v1169
      %v1173 = vmul.f32 %v1160, %v1169
      %v1174 = vmul.f32 %v1161, %v1169
      %v1175 = vmul.f32 %v1162, %v1169
      %v1176 = vmul.f32 %v1163, %v1169
      %v1177 = vmul.f32 %v1164, %v1169
      %v1178 = vadd.f32 %v1149, %v1170
      %v1179 = vadd.f32 %v1150, %v1171
      %v1180 = vadd.f32 %v1151, %v1172
      %v1181 = vadd.f32 %v1152, %v1173
      %v1182 = vadd.f32 %v1153, %v1174
      %v1183 = vadd.f32 %v1154, %v1175
      %v1184 = vadd.f32 %v1155, %v1176
      %v1185 = vadd.f32 %v1156, %v1177
      %v1186 = vld [vmem:[%s1083] sm:$0xff]
      %v1187 = vld [vmem:[%s1083 + $0x10] sm:$0xff]
      %v1188 = vld [vmem:[%s1083 + $0x20] sm:$0xff]
      %v1189 = vld [vmem:[%s1083 + $0x30] sm:$0xff]
      %v1190 = vld [vmem:[%s1083 + $0x40] sm:$0xff]
      %v1191 = vld [vmem:[%s1083 + $0x50] sm:$0xff]
      %v1192 = vld [vmem:[%s1083 + $0x60] sm:$0xff]
      %v1193 = vld [vmem:[%s1083 + $0x70] sm:$0xff]
      %v1194 = vld [vmem:[%s5 + $0x3] sm:$0x1]
      %v1195 = vlaneseq
      %v1196 = vshrl.u32 %v1195, 7
      %v1197 = vsub.s32 0, %v1196
      %v1198 = vrot.slane %v1194, %v1197
      %v1199 = vmul.f32 %v1186, %v1198
      %v1200 = vmul.f32 %v1187, %v1198
      %v1201 = vmul.f32 %v1188, %v1198
      %v1202 = vmul.f32 %v1189, %v1198
      %v1203 = vmul.f32 %v1190, %v1198
      %v1204 = vmul.f32 %v1191, %v1198
      %v1205 = vmul.f32 %v1192, %v1198
      %v1206 = vmul.f32 %v1193, %v1198
      %v1207 = vadd.f32 %v1178, %v1199
      %v1208 = vadd.f32 %v1179, %v1200
      %v1209 = vadd.f32 %v1180, %v1201
      %v1210 = vadd.f32 %v1181, %v1202
      %v1211 = vadd.f32 %v1182, %v1203
      %v1212 = vadd.f32 %v1183, %v1204
      %v1213 = vadd.f32 %v1184, %v1205
      %v1214 = vadd.f32 %v1185, %v1206
      %v1215 = vld [vmem:[%s1083 + $0x1] sm:$0xff]
      %v1216 = vld [vmem:[%s1083 + $0x11] sm:$0xff]
      %v1217 = vld [vmem:[%s1083 + $0x21] sm:$0xff]
      %v1218 = vld [vmem:[%s1083 + $0x31] sm:$0xff]
      %v1219 = vld [vmem:[%s1083 + $0x41] sm:$0xff]
      %v1220 = vld [vmem:[%s1083 + $0x51] sm:$0xff]
      %v1221 = vld [vmem:[%s1083 + $0x61] sm:$0xff]
      %v1222 = vld [vmem:[%s1083 + $0x71] sm:$0xff]
      %v1223 = vld [vmem:[%s5 + $0x4] sm:$0x1]
      %v1224 = vlaneseq
      %v1225 = vshrl.u32 %v1224, 7
      %v1226 = vsub.s32 0, %v1225
      %v1227 = vrot.slane %v1223, %v1226
      %v1228 = vmul.f32 %v1215, %v1227
      %v1229 = vmul.f32 %v1216, %v1227
      %v1230 = vmul.f32 %v1217, %v1227
      %v1231 = vmul.f32 %v1218, %v1227
      %v1232 = vmul.f32 %v1219, %v1227
      %v1233 = vmul.f32 %v1220, %v1227
      %v1234 = vmul.f32 %v1221, %v1227
      %v1235 = vmul.f32 %v1222, %v1227
      %v1236 = vadd.f32 %v1207, %v1228
      %v1237 = vadd.f32 %v1208, %v1229
      %v1238 = vadd.f32 %v1209, %v1230
      %v1239 = vadd.f32 %v1210, %v1231
      %v1240 = vadd.f32 %v1211, %v1232
      %v1241 = vadd.f32 %v1212, %v1233
      %v1242 = vadd.f32 %v1213, %v1234
      %v1243 = vadd.f32 %v1214, %v1235
      %v1244 = vld [vmem:[%s1083 + $0x2] sm:$0xff]
      %v1245 = vld [vmem:[%s1083 + $0x12] sm:$0xff]
      %v1246 = vld [vmem:[%s1083 + $0x22] sm:$0xff]
      %v1247 = vld [vmem:[%s1083 + $0x32] sm:$0xff]
      %v1248 = vld [vmem:[%s1083 + $0x42] sm:$0xff]
      %v1249 = vld [vmem:[%s1083 + $0x52] sm:$0xff]
      %v1250 = vld [vmem:[%s1083 + $0x62] sm:$0xff]
      %v1251 = vld [vmem:[%s1083 + $0x72] sm:$0xff]
      %v1252 = vld [vmem:[%s5 + $0x5] sm:$0x1]
      %v1253 = vlaneseq
      %v1254 = vshrl.u32 %v1253, 7
      %v1255 = vsub.s32 0, %v1254
      %v1256 = vrot.slane %v1252, %v1255
      %v1257 = vmul.f32 %v1244, %v1256
      %v1258 = vmul.f32 %v1245, %v1256
      %v1259 = vmul.f32 %v1246, %v1256
      %v1260 = vmul.f32 %v1247, %v1256
      %v1261 = vmul.f32 %v1248, %v1256
      %v1262 = vmul.f32 %v1249, %v1256
      %v1263 = vmul.f32 %v1250, %v1256
      %v1264 = vmul.f32 %v1251, %v1256
      %v1265 = vadd.f32 %v1236, %v1257
      %v1266 = vadd.f32 %v1237, %v1258
      %v1267 = vadd.f32 %v1238, %v1259
      %v1268 = vadd.f32 %v1239, %v1260
      %v1269 = vadd.f32 %v1240, %v1261
      %v1270 = vadd.f32 %v1241, %v1262
      %v1271 = vadd.f32 %v1242, %v1263
      %v1272 = vadd.f32 %v1243, %v1264
      %v1273 = vld [vmem:[%s1085] sm:$0xff]
      %v1274 = vld [vmem:[%s1085 + $0x10] sm:$0xff]
      %v1275 = vld [vmem:[%s1085 + $0x20] sm:$0xff]
      %v1276 = vld [vmem:[%s1085 + $0x30] sm:$0xff]
      %v1277 = vld [vmem:[%s1085 + $0x40] sm:$0xff]
      %v1278 = vld [vmem:[%s1085 + $0x50] sm:$0xff]
      %v1279 = vld [vmem:[%s1085 + $0x60] sm:$0xff]
      %v1280 = vld [vmem:[%s1085 + $0x70] sm:$0xff]
      %v1281 = vld [vmem:[%s5 + $0x6] sm:$0x1]
      %v1282 = vlaneseq
      %v1283 = vshrl.u32 %v1282, 7
      %v1284 = vsub.s32 0, %v1283
      %v1285 = vrot.slane %v1281, %v1284
      %v1286 = vmul.f32 %v1273, %v1285
      %v1287 = vmul.f32 %v1274, %v1285
      %v1288 = vmul.f32 %v1275, %v1285
      %v1289 = vmul.f32 %v1276, %v1285
      %v1290 = vmul.f32 %v1277, %v1285
      %v1291 = vmul.f32 %v1278, %v1285
      %v1292 = vmul.f32 %v1279, %v1285
      %v1293 = vmul.f32 %v1280, %v1285
      %v1294 = vadd.f32 %v1265, %v1286
      %v1295 = vadd.f32 %v1266, %v1287
      %v1296 = vadd.f32 %v1267, %v1288
      %v1297 = vadd.f32 %v1268, %v1289
      %v1298 = vadd.f32 %v1269, %v1290
      %v1299 = vadd.f32 %v1270, %v1291
      %v1300 = vadd.f32 %v1271, %v1292
      %v1301 = vadd.f32 %v1272, %v1293
      %v1302 = vld [vmem:[%s1085 + $0x1] sm:$0xff]
      %v1303 = vld [vmem:[%s1085 + $0x11] sm:$0xff]
      %v1304 = vld [vmem:[%s1085 + $0x21] sm:$0xff]
      %v1305 = vld [vmem:[%s1085 + $0x31] sm:$0xff]
      %v1306 = vld [vmem:[%s1085 + $0x41] sm:$0xff]
      %v1307 = vld [vmem:[%s1085 + $0x51] sm:$0xff]
      %v1308 = vld [vmem:[%s1085 + $0x61] sm:$0xff]
      %v1309 = vld [vmem:[%s1085 + $0x71] sm:$0xff]
      %v1310 = vld [vmem:[%s5 + $0x7] sm:$0x1]
      %v1311 = vlaneseq
      %v1312 = vshrl.u32 %v1311, 7
      %v1313 = vsub.s32 0, %v1312
      %v1314 = vrot.slane %v1310, %v1313
      %v1315 = vmul.f32 %v1302, %v1314
      %v1316 = vmul.f32 %v1303, %v1314
      %v1317 = vmul.f32 %v1304, %v1314
      %v1318 = vmul.f32 %v1305, %v1314
      %v1319 = vmul.f32 %v1306, %v1314
      %v1320 = vmul.f32 %v1307, %v1314
      %v1321 = vmul.f32 %v1308, %v1314
      %v1322 = vmul.f32 %v1309, %v1314
      %v1323 = vadd.f32 %v1294, %v1315
      %v1324 = vadd.f32 %v1295, %v1316
      %v1325 = vadd.f32 %v1296, %v1317
      %v1326 = vadd.f32 %v1297, %v1318
      %v1327 = vadd.f32 %v1298, %v1319
      %v1328 = vadd.f32 %v1299, %v1320
      %v1329 = vadd.f32 %v1300, %v1321
      %v1330 = vadd.f32 %v1301, %v1322
      %v1331 = vld [vmem:[%s1085 + $0x2] sm:$0xff]
      %v1332 = vld [vmem:[%s1085 + $0x12] sm:$0xff]
      %v1333 = vld [vmem:[%s1085 + $0x22] sm:$0xff]
      %v1334 = vld [vmem:[%s1085 + $0x32] sm:$0xff]
      %v1335 = vld [vmem:[%s1085 + $0x42] sm:$0xff]
      %v1336 = vld [vmem:[%s1085 + $0x52] sm:$0xff]
      %v1337 = vld [vmem:[%s1085 + $0x62] sm:$0xff]
      %v1338 = vld [vmem:[%s1085 + $0x72] sm:$0xff]
      %v1339 = vld [vmem:[%s5 + $0x8] sm:$0x1]
      %v1340 = vlaneseq
      %v1341 = vshrl.u32 %v1340, 7
      %v1342 = vsub.s32 0, %v1341
      %v1343 = vrot.slane %v1339, %v1342
      %v1344 = vmul.f32 %v1331, %v1343
      %v1345 = vmul.f32 %v1332, %v1343
      %v1346 = vmul.f32 %v1333, %v1343
      %v1347 = vmul.f32 %v1334, %v1343
      %v1348 = vmul.f32 %v1335, %v1343
      %v1349 = vmul.f32 %v1336, %v1343
      %v1350 = vmul.f32 %v1337, %v1343
      %v1351 = vmul.f32 %v1338, %v1343
      %v1352 = vadd.f32 %v1323, %v1344
      %v1353 = vadd.f32 %v1324, %v1345
      %v1354 = vadd.f32 %v1325, %v1346
      %v1355 = vadd.f32 %v1326, %v1347
      %v1356 = vadd.f32 %v1327, %v1348
      %v1357 = vadd.f32 %v1328, %v1349
      %v1358 = vadd.f32 %v1329, %v1350
      %v1359 = vadd.f32 %v1330, %v1351
      %v1360 = vld [vmem:[%s6] sm:$0x1]
      %v1362 = vlaneseq
      %v1363 = vshrl.u32 %v1362, 7
      %v1364 = vsub.s32 0, %v1363
      %v1365 = vrot.slane %v1360, %v1364
      %v1367 = vmul.f32 %v1352, %v1365
      %v1368 = vmul.f32 %v1353, %v1365
      %v1369 = vmul.f32 %v1354, %v1365
      %v1370 = vmul.f32 %v1355, %v1365
      %v1371 = vmul.f32 %v1356, %v1365
      %v1372 = vmul.f32 %v1357, %v1365
      %v1373 = vmul.f32 %v1358, %v1365
      %v1374 = vmul.f32 %v1359, %v1365
      %v1375 = vld [vmem:[%s7] sm:$0x1]
      %v1377 = vlaneseq
      %v1378 = vshrl.u32 %v1377, 7
      %v1379 = vsub.s32 0, %v1378
      %v1380 = vrot.slane %v1375, %v1379
      %v1382 = vadd.f32 %v1367, %v1380
      %v1383 = vadd.f32 %v1368, %v1380
      %v1384 = vadd.f32 %v1369, %v1380
      %v1385 = vadd.f32 %v1370, %v1380
      %v1386 = vadd.f32 %v1371, %v1380
      %v1387 = vadd.f32 %v1372, %v1380
      %v1388 = vadd.f32 %v1373, %v1380
      %v1389 = vadd.f32 %v1374, %v1380
      %v1391 = vsel %vm416, %v1382, 0
      %v1394 = vsel %vm416, %v1383, 0
      %v1397 = vsel %vm416, %v1384, 0
      %v1400 = vsel %vm416, %v1385, 0
      %v1403 = vsel %vm416, %v1386, 0
      %v1406 = vsel %vm416, %v1387, 0
      %v1409 = vsel %vm416, %v1388, 0
      %v1412 = vsel %vm416, %v1389, 0
      %1414 = vmatprep.subr.mxu0 0.0
      %1415 = vmatpush1.msra.mxu0 %v724
      %1416 = vmatprep.subr.mxu0 0.0
      %1417 = vmatpush1.msra.mxu0 0.0
      %1418 = vmatprep.subr.mxu0 0.0
      %1419 = vmatpush1.msra.mxu0 0.0
      %1420 = vmatprep.subr.mxu0 0.0
      %1421 = vmatpush1.msra.mxu0 0.0
      %1422 = vmatprep.subr.mxu0 0.0
      %1423 = vmatpush1.msra.mxu0 0.0
      %1424 = vmatprep.subr.mxu0 0.0
      %1425 = vmatpush1.msra.mxu0 0.0
      %1426 = vmatprep.subr.mxu0 0.0
      %1427 = vmatpush1.msra.mxu0 0.0
      %1428 = vmatprep.subr.mxu0 0.0
      %1429 = vmatpush1.msra.mxu0 0.0
      %1430 = vmatprep.subr.mxu0 0.0
      %1431 = vmatpush1.msra.mxu0 0.0
      %1432 = vmatprep.subr.mxu0 0.0
      %1433 = vmatpush1.msra.mxu0 0.0
      %1434 = vmatprep.subr.mxu0 0.0
      %1435 = vmatpush1.msra.mxu0 0.0
      %1436 = vmatprep.subr.mxu0 0.0
      %1437 = vmatpush1.msra.mxu0 0.0
      %1438 = vmatprep.subr.mxu0 0.0
      %1439 = vmatpush1.msra.mxu0 0.0
      %1440 = vmatprep.subr.mxu0 0.0
      %1441 = vmatpush1.msra.mxu0 0.0
      %1442 = vmatprep.subr.mxu0 0.0
      %1443 = vmatpush1.msra.mxu0 0.0
      %1444 = vmatprep.subr.mxu0 0.0
      %1445 = vmatpush1.msra.mxu0 0.0
      %1446 = vmatprep.subr.mxu0 0.0
      %1447 = vmatpush1.msra.mxu0 0.0
      %1448 = vmatprep.subr.mxu0 0.0
      %1449 = vmatpush1.msra.mxu0 0.0
      %1450 = vmatprep.subr.mxu0 0.0
      %1451 = vmatpush1.msra.mxu0 0.0
      %1452 = vmatprep.subr.mxu0 0.0
      %1453 = vmatpush1.msra.mxu0 0.0
      %1454 = vmatprep.subr.mxu0 0.0
      %1455 = vmatpush1.msra.mxu0 0.0
      %1456 = vmatprep.subr.mxu0 0.0
      %1457 = vmatpush1.msra.mxu0 0.0
      %1458 = vmatprep.subr.mxu0 0.0
      %1459 = vmatpush1.msra.mxu0 0.0
      %1460 = vmatprep.subr.mxu0 0.0
      %1461 = vmatpush1.msra.mxu0 0.0
      %1462 = vmatprep.subr.mxu0 0.0
      %1463 = vmatpush1.msra.mxu0 0.0
      %1464 = vmatprep.subr.mxu0 0.0
      %1465 = vmatpush1.msra.mxu0 0.0
      %1466 = vmatprep.subr.mxu0 0.0
      %1467 = vmatpush1.msra.mxu0 0.0
      %1468 = vmatprep.subr.mxu0 0.0
      %1469 = vmatpush1.msra.mxu0 0.0
      %1470 = vmatprep.subr.mxu0 0.0
      %1471 = vmatpush1.msra.mxu0 0.0
      %1472 = vmatprep.subr.mxu0 0.0
      %1473 = vmatpush1.msra.mxu0 0.0
      %1474 = vmatprep.subr.mxu0 0.0
      %1475 = vmatpush1.msra.mxu0 0.0
      %1476 = vmatprep.subr.mxu0 0.0
      %1477 = vmatpush1.msra.mxu0 0.0
      %1478 = vmatprep.mubr.f32.mxu0 0.0
      %1479 = vmatmul.mubr.f32.gmra.mrb[0].mxu0 %v1391
      %v1480 = vpop.f32.mrb[0].mxu0
      %v1481 = vadd.f32 0.0, %v1480
      %v1482 = vpop.f32.mrb[0].mxu0
      %1483 = vmatprep.mubr.f32.mxu0 0.0
      %1484 = vmatmul.mubr.f32.gmra.mrb[0].mxu0 %v1394
      %v1485 = vpop.f32.mrb[0].mxu0
      %v1486 = vadd.f32 0.0, %v1485
      %v1487 = vpop.f32.mrb[0].mxu0
      %1488 = vmatprep.mubr.f32.mxu0 0.0
      %1489 = vmatmul.mubr.f32.gmra.mrb[0].mxu0 %v1397
      %v1490 = vpop.f32.mrb[0].mxu0
      %v1491 = vadd.f32 0.0, %v1490
      %v1492 = vpop.f32.mrb[0].mxu0
      %1493 = vmatprep.mubr.f32.mxu0 0.0
      %1494 = vmatmul.mubr.f32.gmra.mrb[0].mxu0 %v1400
      %v1495 = vpop.f32.mrb[0].mxu0
      %v1496 = vadd.f32 0.0, %v1495
      %v1497 = vpop.f32.mrb[0].mxu0
      %1498 = vmatprep.mubr.f32.mxu0 0.0
      %1499 = vmatmul.mubr.f32.gmra.mrb[0].mxu0 %v1403
      %v1500 = vpop.f32.mrb[0].mxu0
      %v1501 = vadd.f32 0.0, %v1500
      %v1502 = vpop.f32.mrb[0].mxu0
      %1503 = vmatprep.mubr.f32.mxu0 0.0
      %1504 = vmatmul.mubr.f32.gmra.mrb[0].mxu0 %v1406
      %v1505 = vpop.f32.mrb[0].mxu0
      %v1506 = vadd.f32 0.0, %v1505
      %v1507 = vpop.f32.mrb[0].mxu0
      %1508 = vmatprep.mubr.f32.mxu0 0.0
      %1509 = vmatmul.mubr.f32.gmra.mrb[0].mxu0 %v1409
      %v1510 = vpop.f32.mrb[0].mxu0
      %v1511 = vadd.f32 0.0, %v1510
      %v1512 = vpop.f32.mrb[0].mxu0
      %1513 = vmatprep.mubr.f32.mxu0 0.0
      %1514 = vmatmul.mubr.f32.gmra.mrb[0].mxu0 %v1412
      %v1515 = vpop.f32.mrb[0].mxu0
      %v1516 = vadd.f32 0.0, %v1515
      %v1517 = vpop.f32.mrb[0].mxu0
      %1518 = vdwg.mxu0
      %v1519 = vsel %vm870, %v1481, 0.0
      %v1520 = vsel %vm871, %v1486, 0.0
      %v1521 = vsel %vm872, %v1491, 0.0
      %v1522 = vsel %vm873, %v1496, 0.0
      %v1523 = vsel %vm874, %v1501, 0.0
      %v1524 = vsel %vm875, %v1506, 0.0
      %v1525 = vsel %vm876, %v1511, 0.0
      %v1526 = vsel %vm877, %v1516, 0.0
      %v1527 = vld [vmem:[%s8] sm:$0xff]
      %v1528 = vld [vmem:[%s8 + $0x8] sm:$0xff]
      %v1529 = vld [vmem:[%s8 + $0x10] sm:$0xff]
      %v1530 = vld [vmem:[%s8 + $0x18] sm:$0xff]
      %v1531 = vld [vmem:[%s8 + $0x20] sm:$0xff]
      %v1532 = vld [vmem:[%s8 + $0x28] sm:$0xff]
      %v1533 = vld [vmem:[%s8 + $0x30] sm:$0xff]
      %v1534 = vld [vmem:[%s8 + $0x38] sm:$0xff]
      %v1536 = vsel %vm894, %v1519, 0
      %v1539 = vsel %vm894, %v1520, 0
      %v1542 = vsel %vm894, %v1521, 0
      %v1545 = vsel %vm894, %v1522, 0
      %v1548 = vsel %vm894, %v1523, 0
      %v1551 = vsel %vm894, %v1524, 0
      %v1554 = vsel %vm894, %v1525, 0
      %v1557 = vsel %vm894, %v1526, 0
      %1559 = vmatprep.subr.mxu0 0.0
      %1560 = vmatpush1.msra.mxu0 %v1527
      %1561 = vmatprep.subr.mxu0 0.0
      %1562 = vmatpush1.msra.mxu0 %v1528
      %1563 = vmatprep.subr.mxu0 0.0
      %1564 = vmatpush1.msra.mxu0 %v1529
      %1565 = vmatprep.subr.mxu0 0.0
      %1566 = vmatpush1.msra.mxu0 %v1530
      %1567 = vmatprep.subr.mxu0 0.0
      %1568 = vmatpush1.msra.mxu0 %v1531
      %1569 = vmatprep.subr.mxu0 0.0
      %1570 = vmatpush1.msra.mxu0 %v1532
      %1571 = vmatprep.subr.mxu0 0.0
      %1572 = vmatpush1.msra.mxu0 %v1533
      %1573 = vmatprep.subr.mxu0 0.0
      %1574 = vmatpush1.msra.mxu0 %v1534
      %1575 = vmatprep.subr.mxu0 0.0
      %1576 = vmatpush1.msra.mxu0 0.0
      %1577 = vmatprep.subr.mxu0 0.0
      %1578 = vmatpush1.msra.mxu0 0.0
      %1579 = vmatprep.subr.mxu0 0.0
      %1580 = vmatpush1.msra.mxu0 0.0
      %1581 = vmatprep.subr.mxu0 0.0
      %1582 = vmatpush1.msra.mxu0 0.0
      %1583 = vmatprep.subr.mxu0 0.0
      %1584 = vmatpush1.msra.mxu0 0.0
      %1585 = vmatprep.subr.mxu0 0.0
      %1586 = vmatpush1.msra.mxu0 0.0
      %1587 = vmatprep.subr.mxu0 0.0
      %1588 = vmatpush1.msra.mxu0 0.0
      %1589 = vmatprep.subr.mxu0 0.0
      %1590 = vmatpush1.msra.mxu0 0.0
      %1591 = vmatprep.subr.mxu0 0.0
      %1592 = vmatpush1.msra.mxu0 0.0
      %1593 = vmatprep.subr.mxu0 0.0
      %1594 = vmatpush1.msra.mxu0 0.0
      %1595 = vmatprep.subr.mxu0 0.0
      %1596 = vmatpush1.msra.mxu0 0.0
      %1597 = vmatprep.subr.mxu0 0.0
      %1598 = vmatpush1.msra.mxu0 0.0
      %1599 = vmatprep.subr.mxu0 0.0
      %1600 = vmatpush1.msra.mxu0 0.0
      %1601 = vmatprep.subr.mxu0 0.0
      %1602 = vmatpush1.msra.mxu0 0.0
      %1603 = vmatprep.subr.mxu0 0.0
      %1604 = vmatpush1.msra.mxu0 0.0
      %1605 = vmatprep.subr.mxu0 0.0
      %1606 = vmatpush1.msra.mxu0 0.0
      %1607 = vmatprep.subr.mxu0 0.0
      %1608 = vmatpush1.msra.mxu0 0.0
      %1609 = vmatprep.subr.mxu0 0.0
      %1610 = vmatpush1.msra.mxu0 0.0
      %1611 = vmatprep.subr.mxu0 0.0
      %1612 = vmatpush1.msra.mxu0 0.0
      %1613 = vmatprep.subr.mxu0 0.0
      %1614 = vmatpush1.msra.mxu0 0.0
      %1615 = vmatprep.subr.mxu0 0.0
      %1616 = vmatpush1.msra.mxu0 0.0
      %1617 = vmatprep.subr.mxu0 0.0
      %1618 = vmatpush1.msra.mxu0 0.0
      %1619 = vmatprep.subr.mxu0 0.0
      %1620 = vmatpush1.msra.mxu0 0.0
      %1621 = vmatprep.subr.mxu0 0.0
      %1622 = vmatpush1.msra.mxu0 0.0
      %1623 = vmatprep.mubr.f32.mxu0 0.0
      %1624 = vmatmul.mubr.f32.gmra.mrb[0].mxu0 %v1536
      %v1625 = vpop.f32.mrb[0].mxu0
      %v1626 = vadd.f32 0.0, %v1625
      %v1627 = vpop.f32.mrb[0].mxu0
      %1628 = vmatprep.mubr.f32.mxu0 0.0
      %1629 = vmatmul.mubr.f32.gmra.mrb[0].mxu0 %v1539
      %v1630 = vpop.f32.mrb[0].mxu0
      %v1631 = vadd.f32 0.0, %v1630
      %v1632 = vpop.f32.mrb[0].mxu0
      %1633 = vmatprep.mubr.f32.mxu0 0.0
      %1634 = vmatmul.mubr.f32.gmra.mrb[0].mxu0 %v1542
      %v1635 = vpop.f32.mrb[0].mxu0
      %v1636 = vadd.f32 0.0, %v1635
      %v1637 = vpop.f32.mrb[0].mxu0
      %1638 = vmatprep.mubr.f32.mxu0 0.0
      %1639 = vmatmul.mubr.f32.gmra.mrb[0].mxu0 %v1545
      %v1640 = vpop.f32.mrb[0].mxu0
      %v1641 = vadd.f32 0.0, %v1640
      %v1642 = vpop.f32.mrb[0].mxu0
      %1643 = vmatprep.mubr.f32.mxu0 0.0
      %1644 = vmatmul.mubr.f32.gmra.mrb[0].mxu0 %v1548
      %v1645 = vpop.f32.mrb[0].mxu0
      %v1646 = vadd.f32 0.0, %v1645
      %v1647 = vpop.f32.mrb[0].mxu0
      %1648 = vmatprep.mubr.f32.mxu0 0.0
      %1649 = vmatmul.mubr.f32.gmra.mrb[0].mxu0 %v1551
      %v1650 = vpop.f32.mrb[0].mxu0
      %v1651 = vadd.f32 0.0, %v1650
      %v1652 = vpop.f32.mrb[0].mxu0
      %1653 = vmatprep.mubr.f32.mxu0 0.0
      %1654 = vmatmul.mubr.f32.gmra.mrb[0].mxu0 %v1554
      %v1655 = vpop.f32.mrb[0].mxu0
      %v1656 = vadd.f32 0.0, %v1655
      %v1657 = vpop.f32.mrb[0].mxu0
      %1658 = vmatprep.mubr.f32.mxu0 0.0
      %1659 = vmatmul.mubr.f32.gmra.mrb[0].mxu0 %v1557
      %v1660 = vpop.f32.mrb[0].mxu0
      %v1661 = vadd.f32 0.0, %v1660
      %v1662 = vpop.f32.mrb[0].mxu0
      %1663 = vdwg.mxu0
      %v1664 = vld [vmem:[%s9] sm:$0x1]
      %v1666 = vlaneseq
      %v1667 = vshrl.u32 %v1666, 7
      %v1668 = vsub.s32 0, %v1667
      %v1669 = vrot.slane %v1664, %v1668
      %v1671 = vmul.f32 %v1626, %v1669
      %v1672 = vmul.f32 %v1631, %v1669
      %v1673 = vmul.f32 %v1636, %v1669
      %v1674 = vmul.f32 %v1641, %v1669
      %v1675 = vmul.f32 %v1646, %v1669
      %v1676 = vmul.f32 %v1651, %v1669
      %v1677 = vmul.f32 %v1656, %v1669
      %v1678 = vmul.f32 %v1661, %v1669
      %v1679 = vld [vmem:[%s10] sm:$0x1]
      %v1681 = vlaneseq
      %v1682 = vshrl.u32 %v1681, 7
      %v1683 = vsub.s32 0, %v1682
      %v1684 = vrot.slane %v1679, %v1683
      %v1686 = vadd.f32 %v1671, %v1684
      %v1687 = vadd.f32 %v1672, %v1684
      %v1688 = vadd.f32 %v1673, %v1684
      %v1689 = vadd.f32 %v1674, %v1684
      %v1690 = vadd.f32 %v1675, %v1684
      %v1691 = vadd.f32 %v1676, %v1684
      %v1692 = vadd.f32 %v1677, %v1684
      %v1693 = vadd.f32 %v1678, %v1684
      %v1694 = vmax.f32 %v1686, 0.0
      %v1695 = vmax.f32 %v1687, 0.0
      %v1696 = vmax.f32 %v1688, 0.0
      %v1697 = vmax.f32 %v1689, 0.0
      %v1698 = vmax.f32 %v1690, 0.0
      %v1699 = vmax.f32 %v1691, 0.0
      %v1700 = vmax.f32 %v1692, 0.0
      %v1701 = vmax.f32 %v1693, 0.0
      %1702 = vxpose.xlu0.b32.start [1/16] %v1694, 128
      %1703 = vxpose.xlu0.b32.cont [2/16] %v1695, 128
      %1704 = vxpose.xlu0.b32.cont [3/16] %v1696, 128
      %1705 = vxpose.xlu0.b32.cont [4/16] %v1697, 128
      %1706 = vxpose.xlu0.b32.cont [5/16] %v1698, 128
      %1707 = vxpose.xlu0.b32.cont [6/16] %v1699, 128
      %1708 = vxpose.xlu0.b32.cont [7/16] %v1700, 128
      %1709 = vxpose.xlu0.b32.cont [8/16] %v1701, 128
      %1710 = vxpose.xlu0.b32.cont [9/16] 0.0, 128
      %1711 = vxpose.xlu0.b32.cont [10/16] 0.0, 128
      %1712 = vxpose.xlu0.b32.cont [11/16] 0.0, 128
      %1713 = vxpose.xlu0.b32.cont [12/16] 0.0, 128
      %1714 = vxpose.xlu0.b32.cont [13/16] 0.0, 128
      %1715 = vxpose.xlu0.b32.cont [14/16] 0.0, 128
      %1716 = vxpose.xlu0.b32.cont [15/16] 0.0, 128
      %1717 = vxpose.xlu0.b32.end [16/16] 0.0, 128
      %v1718 = vpop.trf.xlu0
      %v1719 = vpop.trf.xlu0
      %v1720 = vpop.trf.xlu0
      %v1721 = vpop.trf.xlu0
      %v1722 = vpop.trf.xlu0
      %v1723 = vpop.trf.xlu0
      %v1724 = vpop.trf.xlu0
      %v1725 = vpop.trf.xlu0
      %v1726 = vpop.trf.xlu0
      %v1727 = vpop.trf.xlu0
      %v1728 = vpop.trf.xlu0
      %v1729 = vpop.trf.xlu0
      %v1730 = vpop.trf.xlu0
      %v1731 = vpop.trf.xlu0
      %v1732 = vpop.trf.xlu0
      %v1733 = vpop.trf.xlu0
      %1734 = vst.msk [vmem:[%s381] sm:$0xff] %vm894, %v1718
      %p1735 = scmp.lt.s32.totalorder %s22, 1
      %s1736 = scalar_select %p1735, %s22, 1
      %s1737 = smul.addr %s1736, 8
      %s1738 = scalar_lea.vmem %s11, %s1737
      // Predicated region
      $region65: #{make_block_forward.1} parent=63 // pred_check
        %p1739 = pneg %p276
      $region66: #{make_block_forward.1} parent=63 // pred_check_branch
        %1741 = sbr.rel (%p1739) target = $region68
      $region67: #{make_block_forward.1} parent=63 // pred_region
        _
      $region68: #{make_block_forward.1} parent=63 // pred_fallthru
        _
    $region64: #{make_block_forward.1} parent=5 // pred_fallthru
      _
    %p1742 = scmp.le.s32.totalorder 2, %s17
    // Predicated region
    $region69: #{make_block_forward.1} parent=5 // pred_check
      %p1743 = pneg %p1742
    $region70: #{make_block_forward.1} parent=5 // pred_check_branch
      %1745 = sbr.rel (%p1743) target = $region72
    $region71: #{make_block_forward.1} parent=5 // pred_region
      %s1746 = ssub.s32 %s17, 2
      // Predicated region
      $region73: #{make_block_forward.1} parent=71 // pred_check
        %p1747 = pneg %p282
      $region74: #{make_block_forward.1} parent=71 // pred_check_branch
        %1749 = sbr.rel (%p1747) target = $region76
      $region75: #{make_block_forward.1} parent=71 // pred_region
        %p1750 = scmp.lt.s32.totalorder %s23, 1
        %s1751 = scalar_select %p1750, %s23, 1
        %s1752 = smul.addr %s1751, 8
        %s1753 = scalar_lea.vmem %s11, %s1752
      $region76: #{make_block_forward.1} parent=71 // pred_fallthru
        _
    $region72: #{make_block_forward.1} parent=5 // pred_fallthru
      _
  $region6: #{make_block_forward.1} parent=0 // loop_footer
    %s21 = sadd.s32 1, %s17
  $region7: #{make_block_forward.1} parent=0 // loop_footer_branch
    %16 = sbr.rel target = $region3
  $region8: #{make_block_forward.1} parent=0 // loop_exit
    _

</llo_original>
